<compile_context>
chip_gen: v7x
topology: tpu7x:2x2x1
jax: 0.10.0
libtpu: 0.0.40
codegen_flags: <defaults>
</compile_context>

<pallas_src>
import functools
import math

import jax
import jax.numpy as jnp
from jax.experimental import pallas as pl
from jax.experimental.pallas import tpu as pltpu

LANE = 128
SUB = 8
_BN_EPS = 1e-5


def _round_up(x, m):
    return ((x + m - 1) // m) * m


def _fwd_kernel(adj_ref, xk_ref, xi_ref, ws_ref, wn_ref, b_ref, h_ref, stats_ref,
                *, n_real, deg_col, tk, resident_x):
    """Pass 1: mean aggregation + SAGEConv linear + masked BN partial stats.

    The pre-BN output block h_ref doubles as the f32 accumulator (its block index is
    constant along the k axis). All program_id/num_programs calls are at top level.
    """
    i = pl.program_id(0)
    k = pl.program_id(1)
    k_last = pl.num_programs(1) - 1
    tn = h_ref.shape[0]
    row_base = i * tn

    @pl.when(k == 0)
    def _():
        h_ref[...] = jnp.zeros_like(h_ref)

    if resident_x:
        # Whole (padded) feature matrix is resident in VMEM; slice the k-tile rows.
        xk = xk_ref[pl.ds(k * tk, tk), :]
    else:
        xk = xk_ref[...]

    # bf16 x bf16 MXU matmul, f32 accumulation. Column `deg_col` of xk is all ones,
    # so that column of the accumulator becomes the in-degree (no row-sum reduction).
    h_ref[...] += jnp.dot(adj_ref[...], xk, preferred_element_type=jnp.float32)

    @pl.when(k == k_last)
    def _():
        agg = h_ref[...]                                        # (tn, dp)
        deg = jnp.maximum(agg[:, deg_col:deg_col + 1], 1.0)     # (tn, 1)
        h_neigh = agg / deg                                     # mean aggregation

        # Two accumulating dots (no (tn, 2*dp) concat temporary).
        h = (jnp.dot(xi_ref[...], ws_ref[...], preferred_element_type=jnp.float32)
             + jnp.dot(h_neigh, wn_ref[...], preferred_element_type=jnp.float32)
             + b_ref[...])
        h_ref[...] = h

        # Masked per-tile BatchNorm partials (rows >= n_real are padding).
        row = jax.lax.broadcasted_iota(jnp.int32, (tn, 1), 0) + row_base
        hm = jnp.where(row < n_real, h, 0.0)
        s = jnp.sum(hm, axis=0, keepdims=True)
        ss = jnp.sum(hm * hm, axis=0, keepdims=True)
        rid = jax.lax.broadcasted_iota(jnp.int32, stats_ref.shape, 0)
        stats_ref[...] = jnp.where(rid == 0, s, jnp.where(rid == 1, ss, 0.0))


def _bn_relu_res_kernel(h_ref, x_ref, scale_ref, shift_ref, o_ref):
    """Pass 2: BatchNorm scale/shift + ReLU + residual. Lane-dense, mem-bound."""
    h = h_ref[...] * scale_ref[...] + shift_ref[...]
    o_ref[...] = x_ref[...] + jnp.maximum(h, 0.0)


def graphsage_layer(adj, x, w_self, w_neigh, bias, gamma, beta,
                    *, tn=256, tk=512, eps=_BN_EPS):
    """GraphSAGELayer forward.

    adj:   (N, N) dense 0/1 adjacency (row = dst, col = src). Pass it as bf16 and
           tile-aligned to skip the padding/cast copy. Mean aggregation assumes 0/1
           edges (degree == row-sum), matching DGL's mean aggregator for unweighted
           graphs.
    x:     (N, D) f32 node features.
    w_self, w_neigh: (D, D); bias/gamma/beta: (D,). Requires in_dim == out_dim
           (the module's residual branch).
    """
    n, d_in = x.shape
    d_out = w_self.shape[1]
    assert adj.shape == (n, n)
    assert d_in == d_out, "residual path requires in_dim == out_dim"

    # Clamp tiles for small graphs (keeps padding small), keep alignment.
    tk = min(tk, _round_up(n, LANE))
    tn = min(tn, tk)
    assert tn % SUB == 0 and tk % LANE == 0

    f32, bf16 = jnp.float32, jnp.bfloat16
    deg_col = d_in                                   # ones column -> degree after adj @ xk
    dp = _round_up(max(d_in + 1, d_out), LANE)       # lane-dense padded feature dim
    n_pad = _round_up(n, math.lcm(tn, tk))
    n_row_tiles = n_pad // tn
    n_k_tiles = n_pad // tk

    # --- padded operands ---------------------------------------------------------------
    # bf16 features + ones column for the aggregation matmul (bf16 exact for the 0/1
    # degree column; feature rounding ~1e-3, accumulation stays f32).
    xk_b = (jnp.zeros((n_pad, dp), bf16)
            .at[:n, :d_in].set(x.astype(bf16))
            .at[:n, deg_col].set(1.0))
    # f32 features for fc_self and the residual path.
    xi_f = jnp.zeros((n_pad, dp), f32).at[:n, :d_in].set(x.astype(f32))

    ws_p = jnp.zeros((dp, dp), f32).at[:d_in, :d_out].set(w_self.astype(f32))
    wn_p = jnp.zeros((dp, dp), f32).at[:d_in, :d_out].set(w_neigh.astype(f32))
    b_p = jnp.zeros((1, dp), f32).at[0, :d_out].set(jnp.reshape(bias, (-1,)).astype(f32))
    gamma_p = jnp.zeros((dp,), f32).at[:d_out].set(jnp.reshape(gamma, (-1,)).astype(f32))
    beta_p = jnp.zeros((dp,), f32).at[:d_out].set(jnp.reshape(beta, (-1,)).astype(f32))

    # Avoid the O(N^2) pad/cast copy when the adjacency is already bf16 & aligned.
    if adj.dtype == bf16 and n_pad == n:
        adj_p = adj
    elif n_pad == n:
        adj_p = adj.astype(bf16)
    else:
        adj_p = jnp.zeros((n_pad, n_pad), bf16).at[:n, :n].set(adj.astype(bf16))

    # Resident-X optimization: keep the whole bf16 feature matrix in VMEM if it fits.
    resident_x = (n_pad * dp * 2) <= (8 << 20)
    if resident_x:
        xk_spec = pl.BlockSpec((n_pad, dp), lambda i, k: (0, 0))
        xk_bytes = n_pad * dp * 2
    else:
        xk_spec = pl.BlockSpec((tk, dp), lambda i, k: (k, 0))
        xk_bytes = n_row_tiles * n_pad * dp * 2      # re-streamed once per row tile

    # --- pass 1: aggregation + fused linear + BN partials --------------------------------
    kernel1 = functools.partial(_fwd_kernel, n_real=n, deg_col=deg_col, tk=tk,
                                resident_x=resident_x)
    flops = 2 * n_pad * n_pad * dp + 2 * 2 * n_pad * dp * dp
    bytes_accessed = (n_pad * n_pad * 2 + xk_bytes + n_pad * dp * 4
                      + 2 * dp * dp * 4 + dp * 4
                      + n_pad * dp * 4 + n_row_tiles * 8 * dp * 4)
    vmem_bytes = (2 * tn * tk * 2                       # adj tile (bf16), double buffered
                  + 2 * (n_pad * dp * 2 if resident_x else tk * dp * 2)   # xk
                  + 2 * tn * dp * 4                     # xi tile
                  + 2 * 2 * dp * dp * 4                 # W_self / W_neigh
                  + 2 * dp * 4                          # bias
                  + 2 * tn * dp * 4                     # h out tile (accumulator)
                  + 2 * 8 * dp * 4)                     # stats tile
    vmem_limit = int(min(max(2 * vmem_bytes, 16 << 20), 48 << 20))   # v7x-safe (<64 MiB)

    h_pad, stats = pl.pallas_call(
        kernel1,
        out_shape=(jax.ShapeDtypeStruct((n_pad, dp), f32),
                   jax.ShapeDtypeStruct((n_row_tiles * 8, dp), f32)),
        grid=(n_row_tiles, n_k_tiles),
        in_specs=[
            pl.BlockSpec((tn, tk), lambda i, k: (i, k)),       # adj tile (bf16)
            xk_spec,                                           # bf16 features (+deg col)
            pl.BlockSpec((tn, dp), lambda i, k: (i, 0)),       # f32 features for fc_self
            pl.BlockSpec((dp, dp), lambda i, k: (0, 0)),       # W_self (padded)
            pl.BlockSpec((dp, dp), lambda i, k: (0, 0)),       # W_neigh (padded)
            pl.BlockSpec((1, dp), lambda i, k: (0, 0)),        # bias
        ],
        out_specs=(
            pl.BlockSpec((tn, dp), lambda i, k: (i, 0)),       # pre-BN h (accumulator)
            pl.BlockSpec((8, dp), lambda i, k: (i, 0)),        # per-tile [sum; sumsq]
        ),
        compiler_params=pltpu.CompilerParams(
            dimension_semantics=("parallel", "arbitrary"),
            vmem_limit_bytes=vmem_limit),
        cost_estimate=pl.CostEstimate(flops=flops, transcendentals=0,
                                      bytes_accessed=bytes_accessed),
    )(adj_p, xk_b, xi_f, ws_p, wn_p, b_p)

    # --- global BatchNorm statistics (tiny per-feature reduction, stays in JAX) ----------
    stats = stats.reshape(n_row_tiles, 8, dp)
    mean = stats[:, 0, :].sum(axis=0) / n
    var = jnp.maximum(stats[:, 1, :].sum(axis=0) / n - mean * mean, 0.0)
    inv_std = jax.lax.rsqrt(var + eps)
    scale = (gamma_p * inv_std).reshape(1, dp)
    shift = (beta_p - mean * gamma_p * inv_std).reshape(1, dp)

    # --- pass 2: BN apply + ReLU + residual (tall lane-dense blocks) ----------------------
    tn2 = min(tk, n_pad)                      # n_pad % tn2 == 0 by construction
    out_pad = pl.pallas_call(
        _bn_relu_res_kernel,
        out_shape=jax.ShapeDtypeStruct((n_pad, dp), f32),
        grid=(n_pad // tn2,),
        in_specs=[
            pl.BlockSpec((tn2, dp), lambda i: (i, 0)),
            pl.BlockSpec((tn2, dp), lambda i: (i, 0)),
            pl.BlockSpec((1, dp), lambda i: (0, 0)),
            pl.BlockSpec((1, dp), lambda i: (0, 0)),
        ],
        out_specs=pl.BlockSpec((tn2, dp), lambda i: (i, 0)),
        compiler_params=pltpu.CompilerParams(dimension_semantics=("parallel",)),
    )(h_pad, xi_f, scale, shift)

    return out_pad[:n, :d_out]


def reference(adj, x, w_self, w_neigh, bias, gamma, beta, eps=_BN_EPS):
    adj = adj.astype(jnp.float32)
    deg = jnp.maximum(adj.sum(-1, keepdims=True), 1.0)
    h_neigh = (adj @ x) / deg
    h = x @ w_self + h_neigh @ w_neigh + bias.reshape(1, -1)
    mean = h.mean(0, keepdims=True)
    var = ((h - mean) ** 2).mean(0, keepdims=True)
    h = (h - mean) / jnp.sqrt(var + eps) * gamma.reshape(1, -1) + beta.reshape(1, -1)
    return x + jnp.maximum(h, 0.0)


if __name__ == "__main__":
    N, D = 1024, 64   # in_dim == out_dim -> residual path active; grid = (4, 2)

    key = jax.random.PRNGKey(0)
    k_adj, k_x, k_ws, k_wn, k_b, k_g, k_be = jax.random.split(key, 7)

    # Deterministic synthetic graph: sparse-ish 0/1 adjacency (row=dst, col=src),
    # already stored as bf16 and tile-aligned so the kernel needs no prep copy.
    adj = (jax.random.uniform(k_adj, (N, N)) < 0.05).astype(jnp.bfloat16)
    x = jax.random.normal(k_x, (N, D), dtype=jnp.float32)

    # SAGEConv parameters (fc_self, fc_neigh, bias).
    w_self = jax.random.normal(k_ws, (D, D), dtype=jnp.float32) * 0.1
    w_neigh = jax.random.normal(k_wn, (D, D), dtype=jnp.float32) * 0.1
    bias = jax.random.normal(k_b, (D,), dtype=jnp.float32) * 0.01

    # BatchNorm1d affine params.
    gamma = 1.0 + 0.1 * jax.random.normal(k_g, (D,), dtype=jnp.float32)
    beta = 0.1 * jax.random.normal(k_be, (D,), dtype=jnp.float32)

    out = graphsage_layer(adj, x, w_self, w_neigh, bias, gamma, beta)
    out = jax.block_until_ready(out)

    ref = reference(adj, x, w_self, w_neigh, bias, gamma, beta)
    assert out.shape == (N, D)
    # Tolerance covers bf16 neighbour-feature rounding (f32 accumulation) and the
    # sum/sum-of-squares form of the BatchNorm variance.
    err = float(jnp.max(jnp.abs(out - ref)))
    assert jnp.allclose(out, ref, atol=3e-3, rtol=3e-3), err

    # TODO(synk): for genuinely sparse graphs at scale, replace the dense adjacency with
    # a CSR / padded-neighbor-list gather via PrefetchScalarGridSpec instead of dense matmul.
    print("KERNEL_OK")
</pallas_src>

<mosaic_0001>
module attributes {stable_mosaic.version = 11 : i64} {
  func.func @_fwd_kernel(%arg0: i32, %arg1: i32, %arg2: memref<256x512xbf16, #tpu.memory_space<vmem>>, %arg3: memref<1024x128xbf16, #tpu.memory_space<vmem>>, %arg4: memref<256x128xf32, #tpu.memory_space<vmem>>, %arg5: memref<128x128xf32, #tpu.memory_space<vmem>>, %arg6: memref<128x128xf32, #tpu.memory_space<vmem>>, %arg7: memref<1x128xf32, #tpu.memory_space<vmem>>, %arg8: memref<256x128xf32, #tpu.memory_space<vmem>>, %arg9: memref<8x128xf32, #tpu.memory_space<vmem>>) attributes {dimension_semantics = [#tpu.dimension_semantics<parallel>, #tpu.dimension_semantics<arbitrary>], iteration_bounds = array<i64: 4, 2>, scalar_prefetch = 0 : i64, scratch_operands = 0 : i64, tpu.core_type = #tpu.core_type<tc>, window_params = [{transform_indices = @transform_0, window_bounds = array<i64: 256, 512>}, {pipeline_mode = #tpu.pipeline_mode<synchronous>, transform_indices = @transform_1, window_bounds = array<i64: 1024, 128>}, {transform_indices = @transform_2, window_bounds = array<i64: 256, 128>}, {pipeline_mode = #tpu.pipeline_mode<synchronous>, transform_indices = @transform_3, window_bounds = array<i64: 128, 128>}, {pipeline_mode = #tpu.pipeline_mode<synchronous>, transform_indices = @transform_4, window_bounds = array<i64: 128, 128>}, {pipeline_mode = #tpu.pipeline_mode<synchronous>, transform_indices = @transform_5, window_bounds = array<i64: 1, 128>}, {transform_indices = @transform_6, window_bounds = array<i64: 256, 128>}, {transform_indices = @transform_7, window_bounds = array<i64: 8, 128>}]} {
    %c256_i32 = arith.constant 256 : i32
    %0 = arith.muli %arg0, %c256_i32 : i32
    %c0_i32 = arith.constant 0 : i32
    %1 = arith.cmpi eq, %arg1, %c0_i32 : i32
    %2 = arith.extui %1 : i1 to i32
    %c0_i32_0 = arith.constant 0 : i32
    %3 = arith.cmpi ne, %2, %c0_i32_0 : i32
    scf.if %3 {
      %cst_8 = arith.constant 0.000000e+00 : f32
      %15 = vector.broadcast %cst_8 : f32 to vector<256x128xf32>
      %c0_9 = arith.constant 0 : index
      %c0_10 = arith.constant 0 : index
      %16 = vector.load %arg8[%c0_9, %c0_10] : memref<256x128xf32, #tpu.memory_space<vmem>>, vector<256x128xf32>
      tpu.vector_store %arg8[%c0_9, %c0_10], %15 {strides = array<i32>} : memref<256x128xf32, #tpu.memory_space<vmem>>, vector<256x128xf32>,
    } else {
    }
    %c512_i32 = arith.constant 512 : i32
    %4 = arith.muli %arg1, %c512_i32 : i32
    %5 = arith.index_cast %4 : i32 to index
    %c0 = arith.constant 0 : index
    %6 = vector.load %arg3[%5, %c0] : memref<1024x128xbf16, #tpu.memory_space<vmem>>, vector<512x128xbf16>
    %c0_1 = arith.constant 0 : index
    %c0_2 = arith.constant 0 : index
    %7 = vector.load %arg8[%c0_1, %c0_2] : memref<256x128xf32, #tpu.memory_space<vmem>>, vector<256x128xf32>
    %c0_3 = arith.constant 0 : index
    %c0_4 = arith.constant 0 : index
    %8 = vector.load %arg2[%c0_3, %c0_4] : memref<256x512xbf16, #tpu.memory_space<vmem>>, vector<256x512xbf16>
    %cst = arith.constant dense<0.000000e+00> : vector<256x128xf32>
    %9 = tpu.matmul %8, %6, %cst {dimension_numbers = #tpu.dot_dimension_numbers<[1], [0], [0], [1], [0, 0, 1, 1], [], []>} : vector<256x512xbf16>, vector<512x128xbf16>, vector<256x128xf32> -> vector<256x128xf32>
    %10 = arith.addf %7, %9 : vector<256x128xf32>
    %c0_5 = arith.constant 0 : index
    %c0_6 = arith.constant 0 : index
    %11 = vector.load %arg8[%c0_5, %c0_6] : memref<256x128xf32, #tpu.memory_space<vmem>>, vector<256x128xf32>
    tpu.vector_store %arg8[%c0_5, %c0_6], %10 {strides = array<i32>} : memref<256x128xf32, #tpu.memory_space<vmem>>, vector<256x128xf32>,
    %c1_i32 = arith.constant 1 : i32
    %12 = arith.cmpi eq, %arg1, %c1_i32 : i32
    %13 = arith.extui %12 : i1 to i32
    %c0_i32_7 = arith.constant 0 : i32
    %14 = arith.cmpi ne, %13, %c0_i32_7 : i32
    scf.if %14 {
      %c0_8 = arith.constant 0 : index
      %c0_9 = arith.constant 0 : index
      %15 = vector.load %arg8[%c0_8, %c0_9] : memref<256x128xf32, #tpu.memory_space<vmem>>, vector<256x128xf32>
      %16 = vector.extract_strided_slice %15 {offsets = [0, 64], sizes = [256, 1], strides = [1, 1]} : vector<256x128xf32> to vector<256x1xf32>
      %cst_10 = arith.constant 1.000000e+00 : f32
      %17 = vector.broadcast %cst_10 : f32 to vector<256x1xf32>
      %18 = arith.maximumf %16, %17 : vector<256x1xf32>
      %19 = vector.broadcast %18 : vector<256x1xf32> to vector<256x128xf32>
      %20 = arith.divf %15, %19 : vector<256x128xf32>
      %c0_11 = arith.constant 0 : index
      %c0_12 = arith.constant 0 : index
      %21 = vector.load %arg4[%c0_11, %c0_12] : memref<256x128xf32, #tpu.memory_space<vmem>>, vector<256x128xf32>
      %c0_13 = arith.constant 0 : index
      %c0_14 = arith.constant 0 : index
      %22 = vector.load %arg5[%c0_13, %c0_14] : memref<128x128xf32, #tpu.memory_space<vmem>>, vector<128x128xf32>
      %cst_15 = arith.constant dense<0.000000e+00> : vector<256x128xf32>
      %23 = tpu.matmul %21, %22, %cst_15 {dimension_numbers = #tpu.dot_dimension_numbers<[1], [0], [0], [1], [0, 0, 1, 1], [], []>} : vector<256x128xf32>, vector<128x128xf32>, vector<256x128xf32> -> vector<256x128xf32>
      %c0_16 = arith.constant 0 : index
      %c0_17 = arith.constant 0 : index
      %24 = vector.load %arg6[%c0_16, %c0_17] : memref<128x128xf32, #tpu.memory_space<vmem>>, vector<128x128xf32>
      %cst_18 = arith.constant dense<0.000000e+00> : vector<256x128xf32>
      %25 = tpu.matmul %20, %24, %cst_18 {dimension_numbers = #tpu.dot_dimension_numbers<[1], [0], [0], [1], [0, 0, 1, 1], [], []>} : vector<256x128xf32>, vector<128x128xf32>, vector<256x128xf32> -> vector<256x128xf32>
      %26 = arith.addf %23, %25 : vector<256x128xf32>
      %c0_19 = arith.constant 0 : index
      %c0_20 = arith.constant 0 : index
      %27 = vector.load %arg7[%c0_19, %c0_20] : memref<1x128xf32, #tpu.memory_space<vmem>>, vector<1x128xf32>
      %28 = vector.broadcast %27 : vector<1x128xf32> to vector<256x128xf32>
      %29 = arith.addf %26, %28 : vector<256x128xf32>
      %c0_21 = arith.constant 0 : index
      %c0_22 = arith.constant 0 : index
      %30 = vector.load %arg8[%c0_21, %c0_22] : memref<256x128xf32, #tpu.memory_space<vmem>>, vector<256x128xf32>
      tpu.vector_store %arg8[%c0_21, %c0_22], %29 {strides = array<i32>} : memref<256x128xf32, #tpu.memory_space<vmem>>, vector<256x128xf32>,
      %31 = tpu.iota {dimensions = array<i32: 0>} : vector<256x1xi32>
      %32 = vector.broadcast %0 : i32 to vector<256x1xi32>
      %33 = arith.addi %31, %32 : vector<256x1xi32>
      %c1024_i32 = arith.constant 1024 : i32
      %34 = vector.broadcast %c1024_i32 : i32 to vector<256x1xi32>
      %35 = arith.cmpi slt, %33, %34 : vector<256x1xi32>
      %cst_23 = arith.constant 0.000000e+00 : f32
      %36 = vector.shape_cast %35 : vector<256x1xi1> to vector<256x1xi1>
      %37 = vector.broadcast %36 : vector<256x1xi1> to vector<256x128xi1>
      %38 = vector.broadcast %cst_23 : f32 to vector<256x128xf32>
      %39 = arith.select %37, %29, %38 : vector<256x128xi1>, vector<256x128xf32>
      %cst_24 = arith.constant dense<0.000000e+00> : vector<128xf32>
      %40 = vector.multi_reduction <add>, %39, %cst_24 [0] : vector<256x128xf32> to vector<128xf32>
      %41 = vector.shape_cast %40 : vector<128xf32> to vector<1x128xf32>
      %42 = arith.mulf %39, %39 : vector<256x128xf32>
      %cst_25 = arith.constant dense<0.000000e+00> : vector<128xf32>
      %43 = vector.multi_reduction <add>, %42, %cst_25 [0] : vector<256x128xf32> to vector<128xf32>
      %44 = vector.shape_cast %43 : vector<128xf32> to vector<1x128xf32>
      %45 = tpu.iota {dimensions = array<i32: 0>} : vector<8x128xi32>
      %c0_i32_26 = arith.constant 0 : i32
      %46 = vector.broadcast %c0_i32_26 : i32 to vector<8x128xi32>
      %47 = arith.cmpi eq, %45, %46 : vector<8x128xi32>
      %c1_i32_27 = arith.constant 1 : i32
      %48 = vector.broadcast %c1_i32_27 : i32 to vector<8x128xi32>
      %49 = arith.cmpi eq, %45, %48 : vector<8x128xi32>
      %cst_28 = arith.constant 0.000000e+00 : f32
      %50 = vector.shape_cast %44 : vector<1x128xf32> to vector<1x128xf32>
      %51 = vector.broadcast %50 : vector<1x128xf32> to vector<8x128xf32>
      %52 = vector.broadcast %cst_28 : f32 to vector<8x128xf32>
      %53 = arith.select %49, %51, %52 : vector<8x128xi1>, vector<8x128xf32>
      %54 = vector.shape_cast %41 : vector<1x128xf32> to vector<1x128xf32>
      %55 = vector.broadcast %54 : vector<1x128xf32> to vector<8x128xf32>
      %56 = arith.select %47, %55, %53 : vector<8x128xi1>, vector<8x128xf32>
      %c0_29 = arith.constant 0 : index
      %c0_30 = arith.constant 0 : index
      %57 = vector.load %arg9[%c0_29, %c0_30] : memref<8x128xf32, #tpu.memory_space<vmem>>, vector<8x128xf32>
      tpu.vector_store %arg9[%c0_29, %c0_30], %56 {strides = array<i32>} : memref<8x128xf32, #tpu.memory_space<vmem>>, vector<8x128xf32>,
    } else {
    }
    return
  }
  func.func @transform_0(%arg0: i32, %arg1: i32) -> (i32, i32) {
    %c0_i32 = arith.constant 0 : i32
    return %arg0, %arg1 : i32, i32
  }
  func.func @transform_1(%arg0: i32, %arg1: i32) -> (i32, i32) {
    %c0_i32 = arith.constant 0 : i32
    %c0_i32_0 = arith.constant 0 : i32
    %c0_i32_1 = arith.constant 0 : i32
    return %c0_i32, %c0_i32_0 : i32, i32
  }
  func.func @transform_2(%arg0: i32, %arg1: i32) -> (i32, i32) {
    %c0_i32 = arith.constant 0 : i32
    %c0_i32_0 = arith.constant 0 : i32
    return %arg0, %c0_i32 : i32, i32
  }
  func.func @transform_3(%arg0: i32, %arg1: i32) -> (i32, i32) {
    %c0_i32 = arith.constant 0 : i32
    %c0_i32_0 = arith.constant 0 : i32
    %c0_i32_1 = arith.constant 0 : i32
    return %c0_i32, %c0_i32_0 : i32, i32
  }
  func.func @transform_4(%arg0: i32, %arg1: i32) -> (i32, i32) {
    %c0_i32 = arith.constant 0 : i32
    %c0_i32_0 = arith.constant 0 : i32
    %c0_i32_1 = arith.constant 0 : i32
    return %c0_i32, %c0_i32_0 : i32, i32
  }
  func.func @transform_5(%arg0: i32, %arg1: i32) -> (i32, i32) {
    %c0_i32 = arith.constant 0 : i32
    %c0_i32_0 = arith.constant 0 : i32
    %c0_i32_1 = arith.constant 0 : i32
    return %c0_i32, %c0_i32_0 : i32, i32
  }
  func.func @transform_6(%arg0: i32, %arg1: i32) -> (i32, i32) {
    %c0_i32 = arith.constant 0 : i32
    %c0_i32_0 = arith.constant 0 : i32
    return %arg0, %c0_i32 : i32, i32
  }
  func.func @transform_7(%arg0: i32, %arg1: i32) -> (i32, i32) {
    %c0_i32 = arith.constant 0 : i32
    %c0_i32_0 = arith.constant 0 : i32
    return %arg0, %c0_i32 : i32, i32
  }
}

</mosaic_0001>

<llo_original>
// kernel: tpu_custom_call.1
$region0: #{tpu_custom_call.1}
  #allocation0 [shape = 'u32[]', space=smem, size = 0x4, offset = 0x4, fixed_abs, tag = 'smem constant byte address 0x4 - core index']
  #allocation1 [shape = 'u32[144,128]{1,0:T(1,128)}', space=vmem, size = 0x12000, scoped, tag = 'internal scratch']
  %s0 = inlined_call_operand.hbm [shape: bf16[1024,1024], index: 0, kind: input, shape index: {}]
  %s1 = inlined_call_operand.hbm [shape: bf16[1024,128], index: 1, kind: input, shape index: {}]
  %s2 = inlined_call_operand.hbm [shape: f32[1024,128], index: 2, kind: input, shape index: {}]
  %s3 = inlined_call_operand.hbm [shape: f32[128,128], index: 3, kind: input, shape index: {}]
  %s4 = inlined_call_operand.hbm [shape: f32[128,128], index: 4, kind: input, shape index: {}]
  %s5 = inlined_call_operand.hbm [shape: f32[1,128], index: 5, kind: input, shape index: {}]
  %s6 = inlined_call_operand.hbm [shape: f32[1024,128], index: 6, kind: output, shape index: {0}]
  %s7 = inlined_call_operand.hbm [shape: f32[32,128], index: 7, kind: output, shape index: {1}]
  %8 = xla_tuple %s6, %s7
  %s9 = sld [smem:[#allocation0]]
  $region97: #{tpu_custom_call.1} parent=0
    _
  %s11 = ssub.s32 1, %s9
  %s12 = scalar_select 0, %s11, %s9
  $region1: #{tpu_custom_call.1} parent=0
    #allocation2 [shape = 'u8[524288]{0}', space=vmem, size = 0x80000, scoped, tag = 'input window, operand 0']
    #allocation3 [shape = 's32[2]{0}', space=sflag, size = 0x8, scoped, tag = 'scoped memory for tpu_custom_call.1']
    #allocation4 [shape = 's32[2]{0}', space=sflag, size = 0x8, scoped, tag = 'scoped memory for tpu_custom_call.1']
    #allocation5 [shape = 'u8[262144]{0}', space=vmem, size = 0x40000, scoped, tag = 'input window, operand 1, single buffered']
    #allocation6 [shape = 's32[1]{0}', space=sflag, size = 0x4, scoped, tag = 'scoped memory for tpu_custom_call.1']
    #allocation7 [shape = 'u8[262144]{0}', space=vmem, size = 0x40000, scoped, tag = 'input window, operand 2']
    #allocation8 [shape = 'u8[65536]{0}', space=vmem, size = 0x10000, scoped, tag = 'input window, operand 3, single buffered']
    #allocation9 [shape = 'u8[65536]{0}', space=vmem, size = 0x10000, scoped, tag = 'input window, operand 4, single buffered']
    #allocation10 [shape = 's32[1]{0}', space=sflag, size = 0x4, scoped, tag = 'scoped memory for tpu_custom_call.1']
    #allocation11 [shape = 'u8[512]{0}', space=vmem, size = 0x400, scoped, tag = 'input window, operand 5, single buffered']
    #allocation12 [shape = 'u8[262144]{0}', space=vmem, size = 0x40000, scoped, tag = 'output window, operand 0']
    #allocation13 [shape = 'u8[8192]{0}', space=vmem, size = 0x2000, scoped, tag = 'output window, operand 1']
    #allocation14 [shape = 's32[2]{0}', space=sflag, size = 0x8, scoped, tag = 'scoped memory for tpu_custom_call.1']
    %13 = vsyncpa [#allocation3], 0
    %s14 = scalar_lea.sflag [#allocation3], 1
    %15 = vsyncpa %s14, 0
    %16 = vsyncpa [#allocation6], 0
    %17 = vsyncpa [#allocation10], 0
    %18 = vsyncpa [#allocation4], 0
    %s19 = scalar_lea.sflag [#allocation4], 1
    %20 = vsyncpa %s19, 0
    %21 = vsyncpa [#allocation14], 0
    %s22 = scalar_lea.sflag [#allocation14], 1
    %23 = vsyncpa %s22, 0
    loop: start=0, step=1, limit=10
    $region2: #{tpu_custom_call.1} parent=1 // loop_pre_header
      _
    $region3: #{tpu_custom_call.1} parent=1 // loop_header
      %s25 = sphi 0, %s29
      %p26 = scmp.ge.s32.totalorder %s25, 10
      %s32 = sphi 0, %s44
      %s33 = sphi 0, %s40
      %s34 = sphi 0, %s32
      %s35 = sphi 0, %s33
      %s36 = sphi 0, %s34
      %s37 = sphi 0, %s35
      %s49 = sphi 0, %s51
      %s52 = sphi 0, %s49
      %s53 = sphi 0, %s52
      %s69 = sphi 0, %s53
      %s73 = sphi 0, %s73
      %s75 = sphi 0, %s73
      %s76 = sphi 0, %s75
      %s90 = sphi 0, %s76
      %s96 = sphi 0, %s98
      %s99 = sphi 0, %s96
      %s100 = sphi 0, %s99
      %s116 = sphi 0, %s100
      %s120 = sphi 0, %s120
      %s122 = sphi 0, %s120
      %s123 = sphi 0, %s122
      %s137 = sphi 0, %s123
      %s141 = sphi 0, %s141
      %s143 = sphi 0, %s141
      %s144 = sphi 0, %s143
      %s158 = sphi 0, %s144
      %s162 = sphi 0, %s162
      %s164 = sphi 0, %s162
      %s165 = sphi 0, %s164
      %s179 = sphi 0, %s165
      %s185 = sphi 0, %s187
      %s188 = sphi 0, %s185
      %s189 = sphi 0, %s188
      %s205 = sphi 0, %s189
      %s211 = sphi 0, %s213
      %s214 = sphi 0, %s211
      %s215 = sphi 0, %s214
      %s231 = sphi 0, %s215
    $region4: #{tpu_custom_call.1} parent=1 // loop_header_branch
      %28 = sbr.rel (%p26) target = $region8
    $region5: #{tpu_custom_call.1} parent=1 // loop_body
      %s30 = ssub.s32 %s25, 1
      %s31 = ssub.s32 %s25, 2
      %s38 = sadd.s32 1, %s33
      %p39 = scmp.ge.s32.totalorder %s38, 2
      %s40 = scalar_select %p39, 0, %s38
      %s41 = sadd.s32 1, %s32
      %s42 = scalar_select %p39, %s41, %s32
      %p43 = scmp.ge.s32.totalorder %s42, 4
      %s44 = scalar_select %p43, 0, %s42
      %s45 = ssub.s32 %s32, %s44
      %s46 = ssub.s32 %s33, %s40
      %s47 = sor.u32 %s45, %s46
      %p48 = scmp.eq.s32.totalorder %s47, 0
      %s50 = sadd.s32 %s49, 1
      %s51 = scalar_select %p48, %s49, %s50
      %p54 = pneg %p48
      %p55 = scmp.eq.s32.totalorder %s25, 7
      %p56 = por %p54, %p55
      %p57 = scmp.ne.s32.totalorder %s49, %s52
      %p58 = scmp.eq.s32.totalorder %s25, 0
      %p59 = por %p57, %p58
      %p60 = scmp.ne.s32.totalorder %s49, %s52
      %p61 = scmp.eq.s32.totalorder %s30, 7
      %p62 = por %p60, %p61
      %p63 = scmp.ne.s32.totalorder %s52, %s53
      %p64 = scmp.eq.s32.totalorder %s30, 0
      %p65 = por %p63, %p64
      %p66 = scmp.ne.s32.totalorder %s52, %s53
      %p67 = scmp.eq.s32.totalorder %s31, 7
      %p68 = por %p66, %p67
      %p70 = scmp.ne.s32.totalorder %s53, %s69
      %p71 = scmp.eq.s32.totalorder %s31, 0
      %p72 = por %p70, %p71
      %s74 = sadd.s32 %s73, 1
      %p77 = scmp.eq.s32.totalorder %s25, 7
      %p78 = scmp.ne.s32.totalorder %s73, %s75
      %p79 = scmp.eq.s32.totalorder %s25, 0
      %p80 = por %p78, %p79
      %p81 = scmp.ne.s32.totalorder %s73, %s75
      %p82 = scmp.eq.s32.totalorder %s30, 7
      %p83 = por %p81, %p82
      %p84 = scmp.ne.s32.totalorder %s75, %s76
      %p85 = scmp.eq.s32.totalorder %s30, 0
      %p86 = por %p84, %p85
      %p87 = scmp.ne.s32.totalorder %s75, %s76
      %p88 = scmp.eq.s32.totalorder %s31, 7
      %p89 = por %p87, %p88
      %p91 = scmp.ne.s32.totalorder %s76, %s90
      %p92 = scmp.eq.s32.totalorder %s31, 0
      %p93 = por %p91, %p92
      %s94 = ssub.s32 %s32, %s44
      %p95 = scmp.eq.s32.totalorder %s94, 0
      %s97 = sadd.s32 %s96, 1
      %s98 = scalar_select %p95, %s96, %s97
      %p101 = pneg %p95
      %p102 = scmp.eq.s32.totalorder %s25, 7
      %p103 = por %p101, %p102
      %p104 = scmp.ne.s32.totalorder %s96, %s99
      %p105 = scmp.eq.s32.totalorder %s25, 0
      %p106 = por %p104, %p105
      %p107 = scmp.ne.s32.totalorder %s96, %s99
      %p108 = scmp.eq.s32.totalorder %s30, 7
      %p109 = por %p107, %p108
      %p110 = scmp.ne.s32.totalorder %s99, %s100
      %p111 = scmp.eq.s32.totalorder %s30, 0
      %p112 = por %p110, %p111
      %p113 = scmp.ne.s32.totalorder %s99, %s100
      %p114 = scmp.eq.s32.totalorder %s31, 7
      %p115 = por %p113, %p114
      %p117 = scmp.ne.s32.totalorder %s100, %s116
      %p118 = scmp.eq.s32.totalorder %s31, 0
      %p119 = por %p117, %p118
      %s121 = sadd.s32 %s120, 1
      %p124 = scmp.eq.s32.totalorder %s25, 7
      %p125 = scmp.ne.s32.totalorder %s120, %s122
      %p126 = scmp.eq.s32.totalorder %s25, 0
      %p127 = por %p125, %p126
      %p128 = scmp.ne.s32.totalorder %s120, %s122
      %p129 = scmp.eq.s32.totalorder %s30, 7
      %p130 = por %p128, %p129
      %p131 = scmp.ne.s32.totalorder %s122, %s123
      %p132 = scmp.eq.s32.totalorder %s30, 0
      %p133 = por %p131, %p132
      %p134 = scmp.ne.s32.totalorder %s122, %s123
      %p135 = scmp.eq.s32.totalorder %s31, 7
      %p136 = por %p134, %p135
      %p138 = scmp.ne.s32.totalorder %s123, %s137
      %p139 = scmp.eq.s32.totalorder %s31, 0
      %p140 = por %p138, %p139
      %s142 = sadd.s32 %s141, 1
      %p145 = scmp.eq.s32.totalorder %s25, 7
      %p146 = scmp.ne.s32.totalorder %s141, %s143
      %p147 = scmp.eq.s32.totalorder %s25, 0
      %p148 = por %p146, %p147
      %p149 = scmp.ne.s32.totalorder %s141, %s143
      %p150 = scmp.eq.s32.totalorder %s30, 7
      %p151 = por %p149, %p150
      %p152 = scmp.ne.s32.totalorder %s143, %s144
      %p153 = scmp.eq.s32.totalorder %s30, 0
      %p154 = por %p152, %p153
      %p155 = scmp.ne.s32.totalorder %s143, %s144
      %p156 = scmp.eq.s32.totalorder %s31, 7
      %p157 = por %p155, %p156
      %p159 = scmp.ne.s32.totalorder %s144, %s158
      %p160 = scmp.eq.s32.totalorder %s31, 0
      %p161 = por %p159, %p160
      %s163 = sadd.s32 %s162, 1
      %p166 = scmp.eq.s32.totalorder %s25, 7
      %p167 = scmp.ne.s32.totalorder %s162, %s164
      %p168 = scmp.eq.s32.totalorder %s25, 0
      %p169 = por %p167, %p168
      %p170 = scmp.ne.s32.totalorder %s162, %s164
      %p171 = scmp.eq.s32.totalorder %s30, 7
      %p172 = por %p170, %p171
      %p173 = scmp.ne.s32.totalorder %s164, %s165
      %p174 = scmp.eq.s32.totalorder %s30, 0
      %p175 = por %p173, %p174
      %p176 = scmp.ne.s32.totalorder %s164, %s165
      %p177 = scmp.eq.s32.totalorder %s31, 7
      %p178 = por %p176, %p177
      %p180 = scmp.ne.s32.totalorder %s165, %s179
      %p181 = scmp.eq.s32.totalorder %s31, 0
      %p182 = por %p180, %p181
      %s183 = ssub.s32 %s32, %s44
      %p184 = scmp.eq.s32.totalorder %s183, 0
      %s186 = sadd.s32 %s185, 1
      %s187 = scalar_select %p184, %s185, %s186
      %p190 = pneg %p184
      %p191 = scmp.eq.s32.totalorder %s25, 7
      %p192 = por %p190, %p191
      %p193 = scmp.ne.s32.totalorder %s185, %s188
      %p194 = scmp.eq.s32.totalorder %s25, 0
      %p195 = por %p193, %p194
      %p196 = scmp.ne.s32.totalorder %s185, %s188
      %p197 = scmp.eq.s32.totalorder %s30, 7
      %p198 = por %p196, %p197
      %p199 = scmp.ne.s32.totalorder %s188, %s189
      %p200 = scmp.eq.s32.totalorder %s30, 0
      %p201 = por %p199, %p200
      %p202 = scmp.ne.s32.totalorder %s188, %s189
      %p203 = scmp.eq.s32.totalorder %s31, 7
      %p204 = por %p202, %p203
      %p206 = scmp.ne.s32.totalorder %s189, %s205
      %p207 = scmp.eq.s32.totalorder %s31, 0
      %p208 = por %p206, %p207
      %s209 = ssub.s32 %s32, %s44
      %p210 = scmp.eq.s32.totalorder %s209, 0
      %s212 = sadd.s32 %s211, 1
      %s213 = scalar_select %p210, %s211, %s212
      %p216 = pneg %p210
      %p217 = scmp.eq.s32.totalorder %s25, 7
      %p218 = por %p216, %p217
      %p219 = scmp.ne.s32.totalorder %s211, %s214
      %p220 = scmp.eq.s32.totalorder %s25, 0
      %p221 = por %p219, %p220
      %p222 = scmp.ne.s32.totalorder %s211, %s214
      %p223 = scmp.eq.s32.totalorder %s30, 7
      %p224 = por %p222, %p223
      %p225 = scmp.ne.s32.totalorder %s214, %s215
      %p226 = scmp.eq.s32.totalorder %s30, 0
      %p227 = por %p225, %p226
      %p228 = scmp.ne.s32.totalorder %s214, %s215
      %p229 = scmp.eq.s32.totalorder %s31, 7
      %p230 = por %p228, %p229
      %p232 = scmp.ne.s32.totalorder %s215, %s231
      %p233 = scmp.eq.s32.totalorder %s31, 0
      %p234 = por %p232, %p233
      %p235 = scmp.le.s32.totalorder 1, %s25
      %p236 = scmp.lt.s32.totalorder %s25, 9
      %p237 = pnand %p235, %p236
      %p238 = pneg %p237
      // Predicated region
      $region9: #{tpu_custom_call.1} parent=5 // pred_check
        _
      $region10: #{tpu_custom_call.1} parent=5 // pred_check_branch
        %240 = sbr.rel (%p237) target = $region12
      $region11: #{tpu_custom_call.1} parent=5 // pred_region
        %s241 = ssub.s32 %s25, 1
        // Predicated region
        $region13: #{tpu_custom_call.1} parent=11 // pred_check
          %p242 = pneg %p86
        $region14: #{tpu_custom_call.1} parent=11 // pred_check_branch
          %244 = sbr.rel (%p242) target = $region16
        $region15: #{tpu_custom_call.1} parent=11 // pred_region
          %s246 = ssub.s32 8192, 8192
          %247 = vsyncadd [#allocation6], %s246
          %s248 = sshll.u32 [#allocation5], 4
          %s249 = int_to_ptr.vmem [resolvable:$true] %s248
          %254 = dma.hbm_to_vmem [thread:$0]  %s1, 8192, %s249, [#allocation6], 64, 64, 4
        $region16: #{tpu_custom_call.1} parent=11 // pred_fallthru
          _
        // Predicated region
        $region17: #{tpu_custom_call.1} parent=11 // pred_check
          %p255 = pneg %p133
        $region18: #{tpu_custom_call.1} parent=11 // pred_check_branch
          %257 = sbr.rel (%p255) target = $region20
        $region19: #{tpu_custom_call.1} parent=11 // pred_region
          %s259 = ssub.s32 2048, 2048
          %260 = vsyncadd [#allocation6], %s259
          %s261 = sshll.u32 [#allocation8], 4
          %s262 = int_to_ptr.vmem [resolvable:$true] %s261
          %267 = dma.hbm_to_vmem [thread:$0]  %s3, 2048, %s262, [#allocation6], 128, 128, 8
        $region20: #{tpu_custom_call.1} parent=11 // pred_fallthru
          _
        // Predicated region
        $region21: #{tpu_custom_call.1} parent=11 // pred_check
          %p268 = pneg %p154
        $region22: #{tpu_custom_call.1} parent=11 // pred_check_branch
          %270 = sbr.rel (%p268) target = $region24
        $region23: #{tpu_custom_call.1} parent=11 // pred_region
          %s272 = ssub.s32 2048, 2048
          %273 = vsyncadd [#allocation10], %s272
          %s274 = sshll.u32 [#allocation9], 4
          %s275 = int_to_ptr.vmem [resolvable:$true] %s274
          %280 = dma.hbm_to_vmem [thread:$0]  %s4, 2048, %s275, [#allocation10], 128, 128, 8
        $region24: #{tpu_custom_call.1} parent=11 // pred_fallthru
          _
        // Predicated region
        $region25: #{tpu_custom_call.1} parent=11 // pred_check
          %p281 = pneg %p175
        $region26: #{tpu_custom_call.1} parent=11 // pred_check_branch
          %283 = sbr.rel (%p281) target = $region28
        $region27: #{tpu_custom_call.1} parent=11 // pred_region
          %s285 = ssub.s32 16, 16
          %286 = vsyncadd [#allocation10], %s285
          %s288 = sshll.u32 [#allocation11], 4
          %s289 = int_to_ptr.vmem [resolvable:$true] %s288
          %291 = dma.hbm_to_vmem [thread:$0]  %s5, 16, %s289, [#allocation10]
        $region28: #{tpu_custom_call.1} parent=11 // pred_fallthru
          _
      $region12: #{tpu_custom_call.1} parent=5 // pred_fallthru
        _
      %p292 = scmp.lt.s32.totalorder %s25, 8
      // Predicated region
      $region29: #{tpu_custom_call.1} parent=5 // pred_check
        %p293 = pneg %p292
      $region30: #{tpu_custom_call.1} parent=5 // pred_check_branch
        %295 = sbr.rel (%p293) target = $region32
      $region31: #{tpu_custom_call.1} parent=5 // pred_region
        // Predicated region
        $region33: #{tpu_custom_call.1} parent=31 // pred_check
          %p296 = pneg %p59
        $region34: #{tpu_custom_call.1} parent=31 // pred_check_branch
          %298 = sbr.rel (%p296) target = $region36
        $region35: #{tpu_custom_call.1} parent=31 // pred_region
          %s299 = sand.u32 %s25, 1
          %s300 = scalar_lea.sflag [#allocation3], %s299
          %s301 = sand.u32 %s49, 1
          %s302 = smul.addr %s301, 512
          %s303 = scalar_lea.vmem [#allocation2], %s302
          %s304 = smul.u32 32, %s32
          %s305 = smul.u32 4, %s33
          %s307 = ssub.s32 8192, 8192
          %308 = vsyncadd %s300, %s307
          %s309 = smul.addr %s304, 8
          %s310 = sadd.s32 %s305, %s309
          %s311 = smul.addr %s310, 64
          %s312 = scalar_lea.hbm %s0, %s311
          %s313 = sshll.u32 %s303, 4
          %s314 = int_to_ptr.vmem [resolvable:$true] %s313
          %319 = dma.hbm_to_vmem [thread:$0]  %s312, 8192, %s314, %s300, 512, 256, 16
        $region36: #{tpu_custom_call.1} parent=31 // pred_fallthru
          _
        // Predicated region
        $region37: #{tpu_custom_call.1} parent=31 // pred_check
          %p320 = pneg %p106
        $region38: #{tpu_custom_call.1} parent=31 // pred_check_branch
          %322 = sbr.rel (%p320) target = $region40
        $region39: #{tpu_custom_call.1} parent=31 // pred_region
          %s323 = sand.u32 %s25, 1
          %s324 = scalar_lea.sflag [#allocation3], %s323
          %s325 = sand.u32 %s96, 1
          %s326 = smul.addr %s325, 256
          %s327 = scalar_lea.vmem [#allocation7], %s326
          %s328 = smul.u32 32, %s32
          %s330 = ssub.s32 4096, 4096
          %331 = vsyncadd %s324, %s330
          %s332 = smul.addr %s328, 128
          %s333 = scalar_lea.hbm %s2, %s332
          %s334 = sshll.u32 %s327, 4
          %s335 = int_to_ptr.vmem [resolvable:$true] %s334
          %340 = dma.hbm_to_vmem [thread:$0]  %s333, 4096, %s335, %s324, 128, 128, 8
        $region40: #{tpu_custom_call.1} parent=31 // pred_fallthru
          _
      $region32: #{tpu_custom_call.1} parent=5 // pred_fallthru
        _
      %p341 = scmp.le.s32.totalorder 1, %s25
      %p342 = scmp.lt.s32.totalorder %s25, 9
      %p343 = pnand %p341, %p342
      %p344 = pneg %p343
      // Predicated region
      $region41: #{tpu_custom_call.1} parent=5 // pred_check
        _
      $region42: #{tpu_custom_call.1} parent=5 // pred_check_branch
        %346 = sbr.rel (%p343) target = $region44
      $region43: #{tpu_custom_call.1} parent=5 // pred_region
        %s347 = ssub.s32 %s25, 1
        %s348 = sand.u32 %s30, 1
        %s349 = scalar_lea.sflag [#allocation3], %s348
        %s350 = sand.u32 %s52, 1
        %s351 = smul.addr %s350, 512
        %s352 = scalar_lea.vmem [#allocation2], %s351
        // Predicated region
        $region45: #{tpu_custom_call.1} parent=43 // pred_check
          %p353 = pneg %p65
        $region46: #{tpu_custom_call.1} parent=43 // pred_check_branch
          %355 = sbr.rel (%p353) target = $region48
        $region47: #{tpu_custom_call.1} parent=43 // pred_region
          %356 = dma.done %s349, 8192
        $region48: #{tpu_custom_call.1} parent=43 // pred_fallthru
          _
        // Predicated region
        $region49: #{tpu_custom_call.1} parent=43 // pred_check
          %p357 = pneg %p86
        $region50: #{tpu_custom_call.1} parent=43 // pred_check_branch
          %359 = sbr.rel (%p357) target = $region52
        $region51: #{tpu_custom_call.1} parent=43 // pred_region
          %360 = dma.done [#allocation6], 8192
        $region52: #{tpu_custom_call.1} parent=43 // pred_fallthru
          _
        %s361 = sand.u32 %s30, 1
        %s362 = scalar_lea.sflag [#allocation3], %s361
        %s363 = sand.u32 %s99, 1
        %s364 = smul.addr %s363, 256
        %s365 = scalar_lea.vmem [#allocation7], %s364
        // Predicated region
        $region53: #{tpu_custom_call.1} parent=43 // pred_check
          %p366 = pneg %p112
        $region54: #{tpu_custom_call.1} parent=43 // pred_check_branch
          %368 = sbr.rel (%p366) target = $region56
        $region55: #{tpu_custom_call.1} parent=43 // pred_region
          %369 = dma.done %s362, 4096
        $region56: #{tpu_custom_call.1} parent=43 // pred_fallthru
          _
        // Predicated region
        $region57: #{tpu_custom_call.1} parent=43 // pred_check
          %p370 = pneg %p133
        $region58: #{tpu_custom_call.1} parent=43 // pred_check_branch
          %372 = sbr.rel (%p370) target = $region60
        $region59: #{tpu_custom_call.1} parent=43 // pred_region
          %373 = dma.done [#allocation6], 2048
        $region60: #{tpu_custom_call.1} parent=43 // pred_fallthru
          _
        // Predicated region
        $region61: #{tpu_custom_call.1} parent=43 // pred_check
          %p374 = pneg %p154
        $region62: #{tpu_custom_call.1} parent=43 // pred_check_branch
          %376 = sbr.rel (%p374) target = $region64
        $region63: #{tpu_custom_call.1} parent=43 // pred_region
          %377 = dma.done [#allocation10], 2048
        $region64: #{tpu_custom_call.1} parent=43 // pred_fallthru
          _
        // Predicated region
        $region65: #{tpu_custom_call.1} parent=43 // pred_check
          %p378 = pneg %p175
        $region66: #{tpu_custom_call.1} parent=43 // pred_check_branch
          %380 = sbr.rel (%p378) target = $region68
        $region67: #{tpu_custom_call.1} parent=43 // pred_region
          %381 = dma.done [#allocation10], 16
        $region68: #{tpu_custom_call.1} parent=43 // pred_fallthru
          _
        %s382 = sand.u32 %s30, 1
        %s383 = scalar_lea.sflag [#allocation3], %s382
        %s384 = sand.u32 %s52, 1
        %s385 = smul.addr %s384, 512
        %s386 = scalar_lea.vmem [#allocation2], %s385
        %p387 = pneg %p65
        %p388 = pneg %p62
        %p389 = pneg %p86
        %p390 = pneg %p83
        %s391 = sand.u32 %s30, 1
        %s392 = scalar_lea.sflag [#allocation3], %s391
        %s393 = sand.u32 %s99, 1
        %s394 = smul.addr %s393, 256
        %s395 = scalar_lea.vmem [#allocation7], %s394
        %p396 = pneg %p112
        %p397 = pneg %p109
        %p398 = pneg %p133
        %p399 = pneg %p130
        %p400 = pneg %p154
        %p401 = pneg %p151
        %p402 = pneg %p175
        %p403 = pneg %p172
        %p404 = pneg %p201
        %p405 = pneg %p198
        %s406 = sand.u32 %s188, 1
        %s407 = scalar_lea.sflag [#allocation4], %s406
        %s408 = sand.u32 %s188, 1
        %s409 = smul.addr %s408, 256
        %s410 = scalar_lea.vmem [#allocation12], %s409
        %p411 = pneg %p227
        %p412 = pneg %p224
        %s413 = sand.u32 %s214, 1
        %s414 = scalar_lea.sflag [#allocation14], %s413
        %s415 = sand.u32 %s214, 1
        %s416 = smul.addr %s415, 8
        %s417 = scalar_lea.vmem [#allocation13], %s416
        %s418 = smul.u32 32, %s34
        %s419 = smul.u32 4, %s35
        %s420 = smul.u32 32, %s34
        %s421 = smul.u32 32, %s34
        %s423 = smul.u32 %s34, 256
        %p424 = scmp.eq.s32.totalorder %s35, 0
        // Predicated region
        $region69: #{tpu_custom_call.1} parent=43 // pred_check
          %p425 = pneg %p424
        $region70: #{tpu_custom_call.1} parent=43 // pred_check_branch
          %427 = sbr.rel (%p425) target = $region72
        $region71: #{tpu_custom_call.1} parent=43 // pred_region
          %428 = vst [vmem:[%s410] sm:$0xff] 0.0
          %429 = vst [vmem:[%s410 + $0x8] sm:$0xff] 0.0
          %430 = vst [vmem:[%s410 + $0x10] sm:$0xff] 0.0
          %431 = vst [vmem:[%s410 + $0x18] sm:$0xff] 0.0
          %432 = vst [vmem:[%s410 + $0x20] sm:$0xff] 0.0
          %433 = vst [vmem:[%s410 + $0x28] sm:$0xff] 0.0
          %434 = vst [vmem:[%s410 + $0x30] sm:$0xff] 0.0
          %435 = vst [vmem:[%s410 + $0x38] sm:$0xff] 0.0
          %436 = vst [vmem:[%s410 + $0x40] sm:$0xff] 0.0
          %437 = vst [vmem:[%s410 + $0x48] sm:$0xff] 0.0
          %438 = vst [vmem:[%s410 + $0x50] sm:$0xff] 0.0
          %439 = vst [vmem:[%s410 + $0x58] sm:$0xff] 0.0
          %440 = vst [vmem:[%s410 + $0x60] sm:$0xff] 0.0
          %441 = vst [vmem:[%s410 + $0x68] sm:$0xff] 0.0
          %442 = vst [vmem:[%s410 + $0x70] sm:$0xff] 0.0
          %443 = vst [vmem:[%s410 + $0x78] sm:$0xff] 0.0
          %444 = vst [vmem:[%s410 + $0x80] sm:$0xff] 0.0
          %445 = vst [vmem:[%s410 + $0x88] sm:$0xff] 0.0
          %446 = vst [vmem:[%s410 + $0x90] sm:$0xff] 0.0
          %447 = vst [vmem:[%s410 + $0x98] sm:$0xff] 0.0
          %448 = vst [vmem:[%s410 + $0xa0] sm:$0xff] 0.0
          %449 = vst [vmem:[%s410 + $0xa8] sm:$0xff] 0.0
          %450 = vst [vmem:[%s410 + $0xb0] sm:$0xff] 0.0
          %451 = vst [vmem:[%s410 + $0xb8] sm:$0xff] 0.0
          %452 = vst [vmem:[%s410 + $0xc0] sm:$0xff] 0.0
          %453 = vst [vmem:[%s410 + $0xc8] sm:$0xff] 0.0
          %454 = vst [vmem:[%s410 + $0xd0] sm:$0xff] 0.0
          %455 = vst [vmem:[%s410 + $0xd8] sm:$0xff] 0.0
          %456 = vst [vmem:[%s410 + $0xe0] sm:$0xff] 0.0
          %457 = vst [vmem:[%s410 + $0xe8] sm:$0xff] 0.0
          %458 = vst [vmem:[%s410 + $0xf0] sm:$0xff] 0.0
          %459 = vst [vmem:[%s410 + $0xf8] sm:$0xff] 0.0
        $region72: #{tpu_custom_call.1} parent=43 // pred_fallthru
          _
        %s460 = smul.u32 %s35, 512
        %s461 = sshra.s32 %s460, 3
        %s462 = sand.u32 %s460, 7
        %s463 = smul.addr %s461, 4
        %s464 = scalar_lea.vmem [#allocation5], %s463
        %v465 = vld [vmem:[%s464] sm:$0xf]
        %v466 = vld [vmem:[%s464 + $0x4] sm:$0xf]
        %v467 = vld [vmem:[%s464 + $0x8] sm:$0xf]
        %v468 = vld [vmem:[%s464 + $0xc] sm:$0xf]
        %v469 = vld [vmem:[%s464 + $0x10] sm:$0xf]
        %v470 = vld [vmem:[%s464 + $0x14] sm:$0xf]
        %v471 = vld [vmem:[%s464 + $0x18] sm:$0xf]
        %v472 = vld [vmem:[%s464 + $0x1c] sm:$0xf]
        %v473 = vld [vmem:[%s464 + $0x20] sm:$0xf]
        %v474 = vld [vmem:[%s464 + $0x24] sm:$0xf]
        %v475 = vld [vmem:[%s464 + $0x28] sm:$0xf]
        %v476 = vld [vmem:[%s464 + $0x2c] sm:$0xf]
        %v477 = vld [vmem:[%s464 + $0x30] sm:$0xf]
        %v478 = vld [vmem:[%s464 + $0x34] sm:$0xf]
        %v479 = vld [vmem:[%s464 + $0x38] sm:$0xf]
        %v480 = vld [vmem:[%s464 + $0x3c] sm:$0xf]
        %v481 = vld [vmem:[%s464 + $0x40] sm:$0xf]
        %v482 = vld [vmem:[%s464 + $0x44] sm:$0xf]
        %v483 = vld [vmem:[%s464 + $0x48] sm:$0xf]
        %v484 = vld [vmem:[%s464 + $0x4c] sm:$0xf]
        %v485 = vld [vmem:[%s464 + $0x50] sm:$0xf]
        %v486 = vld [vmem:[%s464 + $0x54] sm:$0xf]
        %v487 = vld [vmem:[%s464 + $0x58] sm:$0xf]
        %v488 = vld [vmem:[%s464 + $0x5c] sm:$0xf]
        %v489 = vld [vmem:[%s464 + $0x60] sm:$0xf]
        %v490 = vld [vmem:[%s464 + $0x64] sm:$0xf]
        %v491 = vld [vmem:[%s464 + $0x68] sm:$0xf]
        %v492 = vld [vmem:[%s464 + $0x6c] sm:$0xf]
        %v493 = vld [vmem:[%s464 + $0x70] sm:$0xf]
        %v494 = vld [vmem:[%s464 + $0x74] sm:$0xf]
        %v495 = vld [vmem:[%s464 + $0x78] sm:$0xf]
        %v496 = vld [vmem:[%s464 + $0x7c] sm:$0xf]
        %v497 = vld [vmem:[%s464 + $0x80] sm:$0xf]
        %v498 = vld [vmem:[%s464 + $0x84] sm:$0xf]
        %v499 = vld [vmem:[%s464 + $0x88] sm:$0xf]
        %v500 = vld [vmem:[%s464 + $0x8c] sm:$0xf]
        %v501 = vld [vmem:[%s464 + $0x90] sm:$0xf]
        %v502 = vld [vmem:[%s464 + $0x94] sm:$0xf]
        %v503 = vld [vmem:[%s464 + $0x98] sm:$0xf]
        %v504 = vld [vmem:[%s464 + $0x9c] sm:$0xf]
        %v505 = vld [vmem:[%s464 + $0xa0] sm:$0xf]
        %v506 = vld [vmem:[%s464 + $0xa4] sm:$0xf]
        %v507 = vld [vmem:[%s464 + $0xa8] sm:$0xf]
        %v508 = vld [vmem:[%s464 + $0xac] sm:$0xf]
        %v509 = vld [vmem:[%s464 + $0xb0] sm:$0xf]
        %v510 = vld [vmem:[%s464 + $0xb4] sm:$0xf]
        %v511 = vld [vmem:[%s464 + $0xb8] sm:$0xf]
        %v512 = vld [vmem:[%s464 + $0xbc] sm:$0xf]
        %v513 = vld [vmem:[%s464 + $0xc0] sm:$0xf]
        %v514 = vld [vmem:[%s464 + $0xc4] sm:$0xf]
        %v515 = vld [vmem:[%s464 + $0xc8] sm:$0xf]
        %v516 = vld [vmem:[%s464 + $0xcc] sm:$0xf]
        %v517 = vld [vmem:[%s464 + $0xd0] sm:$0xf]
        %v518 = vld [vmem:[%s464 + $0xd4] sm:$0xf]
        %v519 = vld [vmem:[%s464 + $0xd8] sm:$0xf]
        %v520 = vld [vmem:[%s464 + $0xdc] sm:$0xf]
        %v521 = vld [vmem:[%s464 + $0xe0] sm:$0xf]
        %v522 = vld [vmem:[%s464 + $0xe4] sm:$0xf]
        %v523 = vld [vmem:[%s464 + $0xe8] sm:$0xf]
        %v524 = vld [vmem:[%s464 + $0xec] sm:$0xf]
        %v525 = vld [vmem:[%s464 + $0xf0] sm:$0xf]
        %v526 = vld [vmem:[%s464 + $0xf4] sm:$0xf]
        %v527 = vld [vmem:[%s464 + $0xf8] sm:$0xf]
        %v528 = vld [vmem:[%s464 + $0xfc] sm:$0xf]
        %v529 = vld [vmem:[%s410] sm:$0xff]
        %v530 = vld [vmem:[%s410 + $0x8] sm:$0xff]
        %v531 = vld [vmem:[%s410 + $0x10] sm:$0xff]
        %v532 = vld [vmem:[%s410 + $0x18] sm:$0xff]
        %v533 = vld [vmem:[%s410 + $0x20] sm:$0xff]
        %v534 = vld [vmem:[%s410 + $0x28] sm:$0xff]
        %v535 = vld [vmem:[%s410 + $0x30] sm:$0xff]
        %v536 = vld [vmem:[%s410 + $0x38] sm:$0xff]
        %v537 = vld [vmem:[%s410 + $0x40] sm:$0xff]
        %v538 = vld [vmem:[%s410 + $0x48] sm:$0xff]
        %v539 = vld [vmem:[%s410 + $0x50] sm:$0xff]
        %v540 = vld [vmem:[%s410 + $0x58] sm:$0xff]
        %v541 = vld [vmem:[%s410 + $0x60] sm:$0xff]
        %v542 = vld [vmem:[%s410 + $0x68] sm:$0xff]
        %v543 = vld [vmem:[%s410 + $0x70] sm:$0xff]
        %v544 = vld [vmem:[%s410 + $0x78] sm:$0xff]
        %v545 = vld [vmem:[%s410 + $0x80] sm:$0xff]
        %v546 = vld [vmem:[%s410 + $0x88] sm:$0xff]
        %v547 = vld [vmem:[%s410 + $0x90] sm:$0xff]
        %v548 = vld [vmem:[%s410 + $0x98] sm:$0xff]
        %v549 = vld [vmem:[%s410 + $0xa0] sm:$0xff]
        %v550 = vld [vmem:[%s410 + $0xa8] sm:$0xff]
        %v551 = vld [vmem:[%s410 + $0xb0] sm:$0xff]
        %v552 = vld [vmem:[%s410 + $0xb8] sm:$0xff]
        %v553 = vld [vmem:[%s410 + $0xc0] sm:$0xff]
        %v554 = vld [vmem:[%s410 + $0xc8] sm:$0xff]
        %v555 = vld [vmem:[%s410 + $0xd0] sm:$0xff]
        %v556 = vld [vmem:[%s410 + $0xd8] sm:$0xff]
        %v557 = vld [vmem:[%s410 + $0xe0] sm:$0xff]
        %v558 = vld [vmem:[%s410 + $0xe8] sm:$0xff]
        %v559 = vld [vmem:[%s410 + $0xf0] sm:$0xff]
        %v560 = vld [vmem:[%s410 + $0xf8] sm:$0xff]
        %v561 = vld [vmem:[%s352] sm:$0xff]
        %v562 = vld [vmem:[%s352 + $0x8] sm:$0xff]
        %v563 = vld [vmem:[%s352 + $0x10] sm:$0xff]
        %v564 = vld [vmem:[%s352 + $0x18] sm:$0xff]
        %v565 = vld [vmem:[%s352 + $0x20] sm:$0xff]
        %v566 = vld [vmem:[%s352 + $0x28] sm:$0xff]
        %v567 = vld [vmem:[%s352 + $0x30] sm:$0xff]
        %v568 = vld [vmem:[%s352 + $0x38] sm:$0xff]
        %v569 = vld [vmem:[%s352 + $0x40] sm:$0xff]
        %v570 = vld [vmem:[%s352 + $0x48] sm:$0xff]
        %v571 = vld [vmem:[%s352 + $0x50] sm:$0xff]
        %v572 = vld [vmem:[%s352 + $0x58] sm:$0xff]
        %v573 = vld [vmem:[%s352 + $0x60] sm:$0xff]
        %v574 = vld [vmem:[%s352 + $0x68] sm:$0xff]
        %v575 = vld [vmem:[%s352 + $0x70] sm:$0xff]
        %v576 = vld [vmem:[%s352 + $0x78] sm:$0xff]
        %v577 = vld [vmem:[%s352 + $0x80] sm:$0xff]
        %v578 = vld [vmem:[%s352 + $0x88] sm:$0xff]
        %v579 = vld [vmem:[%s352 + $0x90] sm:$0xff]
        %v580 = vld [vmem:[%s352 + $0x98] sm:$0xff]
        %v581 = vld [vmem:[%s352 + $0xa0] sm:$0xff]
        %v582 = vld [vmem:[%s352 + $0xa8] sm:$0xff]
        %v583 = vld [vmem:[%s352 + $0xb0] sm:$0xff]
        %v584 = vld [vmem:[%s352 + $0xb8] sm:$0xff]
        %v585 = vld [vmem:[%s352 + $0xc0] sm:$0xff]
        %v586 = vld [vmem:[%s352 + $0xc8] sm:$0xff]
        %v587 = vld [vmem:[%s352 + $0xd0] sm:$0xff]
        %v588 = vld [vmem:[%s352 + $0xd8] sm:$0xff]
        %v589 = vld [vmem:[%s352 + $0xe0] sm:$0xff]
        %v590 = vld [vmem:[%s352 + $0xe8] sm:$0xff]
        %v591 = vld [vmem:[%s352 + $0xf0] sm:$0xff]
        %v592 = vld [vmem:[%s352 + $0xf8] sm:$0xff]
        %v593 = vld [vmem:[%s352 + $0x100] sm:$0xff]
        %v594 = vld [vmem:[%s352 + $0x108] sm:$0xff]
        %v595 = vld [vmem:[%s352 + $0x110] sm:$0xff]
        %v596 = vld [vmem:[%s352 + $0x118] sm:$0xff]
        %v597 = vld [vmem:[%s352 + $0x120] sm:$0xff]
        %v598 = vld [vmem:[%s352 + $0x128] sm:$0xff]
        %v599 = vld [vmem:[%s352 + $0x130] sm:$0xff]
        %v600 = vld [vmem:[%s352 + $0x138] sm:$0xff]
        %v601 = vld [vmem:[%s352 + $0x140] sm:$0xff]
        %v602 = vld [vmem:[%s352 + $0x148] sm:$0xff]
        %v603 = vld [vmem:[%s352 + $0x150] sm:$0xff]
        %v604 = vld [vmem:[%s352 + $0x158] sm:$0xff]
        %v605 = vld [vmem:[%s352 + $0x160] sm:$0xff]
        %v606 = vld [vmem:[%s352 + $0x168] sm:$0xff]
        %v607 = vld [vmem:[%s352 + $0x170] sm:$0xff]
        %v608 = vld [vmem:[%s352 + $0x178] sm:$0xff]
        %v609 = vld [vmem:[%s352 + $0x180] sm:$0xff]
        %v610 = vld [vmem:[%s352 + $0x188] sm:$0xff]
        %v611 = vld [vmem:[%s352 + $0x190] sm:$0xff]
        %v612 = vld [vmem:[%s352 + $0x198] sm:$0xff]
        %v613 = vld [vmem:[%s352 + $0x1a0] sm:$0xff]
        %v614 = vld [vmem:[%s352 + $0x1a8] sm:$0xff]
        %v615 = vld [vmem:[%s352 + $0x1b0] sm:$0xff]
        %v616 = vld [vmem:[%s352 + $0x1b8] sm:$0xff]
        %v617 = vld [vmem:[%s352 + $0x1c0] sm:$0xff]
        %v618 = vld [vmem:[%s352 + $0x1c8] sm:$0xff]
        %v619 = vld [vmem:[%s352 + $0x1d0] sm:$0xff]
        %v620 = vld [vmem:[%s352 + $0x1d8] sm:$0xff]
        %v621 = vld [vmem:[%s352 + $0x1e0] sm:$0xff]
        %v622 = vld [vmem:[%s352 + $0x1e8] sm:$0xff]
        %v623 = vld [vmem:[%s352 + $0x1f0] sm:$0xff]
        %v624 = vld [vmem:[%s352 + $0x1f8] sm:$0xff]
        %v689 = vunpack.c.l.b16 %v561
        %v690 = vunpack.c.h.b16 %v561
        %v691 = vunpack.c.l.b16 %v562
        %v692 = vunpack.c.h.b16 %v562
        %v693 = vunpack.c.l.b16 %v563
        %v694 = vunpack.c.h.b16 %v563
        %v695 = vunpack.c.l.b16 %v564
        %v696 = vunpack.c.h.b16 %v564
        %v697 = vunpack.c.l.b16 %v565
        %v698 = vunpack.c.h.b16 %v565
        %v699 = vunpack.c.l.b16 %v566
        %v700 = vunpack.c.h.b16 %v566
        %v701 = vunpack.c.l.b16 %v567
        %v702 = vunpack.c.h.b16 %v567
        %v703 = vunpack.c.l.b16 %v568
        %v704 = vunpack.c.h.b16 %v568
        %v705 = vunpack.c.l.b16 %v569
        %v706 = vunpack.c.h.b16 %v569
        %v707 = vunpack.c.l.b16 %v570
        %v708 = vunpack.c.h.b16 %v570
        %v709 = vunpack.c.l.b16 %v571
        %v710 = vunpack.c.h.b16 %v571
        %v711 = vunpack.c.l.b16 %v572
        %v712 = vunpack.c.h.b16 %v572
        %v713 = vunpack.c.l.b16 %v573
        %v714 = vunpack.c.h.b16 %v573
        %v715 = vunpack.c.l.b16 %v574
        %v716 = vunpack.c.h.b16 %v574
        %v717 = vunpack.c.l.b16 %v575
        %v718 = vunpack.c.h.b16 %v575
        %v719 = vunpack.c.l.b16 %v576
        %v720 = vunpack.c.h.b16 %v576
        %v721 = vunpack.c.l.b16 %v577
        %v722 = vunpack.c.h.b16 %v577
        %v723 = vunpack.c.l.b16 %v578
        %v724 = vunpack.c.h.b16 %v578
        %v725 = vunpack.c.l.b16 %v579
        %v726 = vunpack.c.h.b16 %v579
        %v727 = vunpack.c.l.b16 %v580
        %v728 = vunpack.c.h.b16 %v580
        %v729 = vunpack.c.l.b16 %v581
        %v730 = vunpack.c.h.b16 %v581
        %v731 = vunpack.c.l.b16 %v582
        %v732 = vunpack.c.h.b16 %v582
        %v733 = vunpack.c.l.b16 %v583
        %v734 = vunpack.c.h.b16 %v583
        %v735 = vunpack.c.l.b16 %v584
        %v736 = vunpack.c.h.b16 %v584
        %v737 = vunpack.c.l.b16 %v585
        %v738 = vunpack.c.h.b16 %v585
        %v739 = vunpack.c.l.b16 %v586
        %v740 = vunpack.c.h.b16 %v586
        %v741 = vunpack.c.l.b16 %v587
        %v742 = vunpack.c.h.b16 %v587
        %v743 = vunpack.c.l.b16 %v588
        %v744 = vunpack.c.h.b16 %v588
        %v745 = vunpack.c.l.b16 %v589
        %v746 = vunpack.c.h.b16 %v589
        %v747 = vunpack.c.l.b16 %v590
        %v748 = vunpack.c.h.b16 %v590
        %v749 = vunpack.c.l.b16 %v591
        %v750 = vunpack.c.h.b16 %v591
        %v751 = vunpack.c.l.b16 %v592
        %v752 = vunpack.c.h.b16 %v592
        %v753 = vunpack.c.l.b16 %v593
        %v754 = vunpack.c.h.b16 %v593
        %v755 = vunpack.c.l.b16 %v594
        %v756 = vunpack.c.h.b16 %v594
        %v757 = vunpack.c.l.b16 %v595
        %v758 = vunpack.c.h.b16 %v595
        %v759 = vunpack.c.l.b16 %v596
        %v760 = vunpack.c.h.b16 %v596
        %v761 = vunpack.c.l.b16 %v597
        %v762 = vunpack.c.h.b16 %v597
        %v763 = vunpack.c.l.b16 %v598
        %v764 = vunpack.c.h.b16 %v598
        %v765 = vunpack.c.l.b16 %v599
        %v766 = vunpack.c.h.b16 %v599
        %v767 = vunpack.c.l.b16 %v600
        %v768 = vunpack.c.h.b16 %v600
        %v769 = vunpack.c.l.b16 %v601
        %v770 = vunpack.c.h.b16 %v601
        %v771 = vunpack.c.l.b16 %v602
        %v772 = vunpack.c.h.b16 %v602
        %v773 = vunpack.c.l.b16 %v603
        %v774 = vunpack.c.h.b16 %v603
        %v775 = vunpack.c.l.b16 %v604
        %v776 = vunpack.c.h.b16 %v604
        %v777 = vunpack.c.l.b16 %v605
        %v778 = vunpack.c.h.b16 %v605
        %v779 = vunpack.c.l.b16 %v606
        %v780 = vunpack.c.h.b16 %v606
        %v781 = vunpack.c.l.b16 %v607
        %v782 = vunpack.c.h.b16 %v607
        %v783 = vunpack.c.l.b16 %v608
        %v784 = vunpack.c.h.b16 %v608
        %v785 = vunpack.c.l.b16 %v609
        %v786 = vunpack.c.h.b16 %v609
        %v787 = vunpack.c.l.b16 %v610
        %v788 = vunpack.c.h.b16 %v610
        %v789 = vunpack.c.l.b16 %v611
        %v790 = vunpack.c.h.b16 %v611
        %v791 = vunpack.c.l.b16 %v612
        %v792 = vunpack.c.h.b16 %v612
        %v793 = vunpack.c.l.b16 %v613
        %v794 = vunpack.c.h.b16 %v613
        %v795 = vunpack.c.l.b16 %v614
        %v796 = vunpack.c.h.b16 %v614
        %v797 = vunpack.c.l.b16 %v615
        %v798 = vunpack.c.h.b16 %v615
        %v799 = vunpack.c.l.b16 %v616
        %v800 = vunpack.c.h.b16 %v616
        %v801 = vunpack.c.l.b16 %v617
        %v802 = vunpack.c.h.b16 %v617
        %v803 = vunpack.c.l.b16 %v618
        %v804 = vunpack.c.h.b16 %v618
        %v805 = vunpack.c.l.b16 %v619
        %v806 = vunpack.c.h.b16 %v619
        %v807 = vunpack.c.l.b16 %v620
        %v808 = vunpack.c.h.b16 %v620
        %v809 = vunpack.c.l.b16 %v621
        %v810 = vunpack.c.h.b16 %v621
        %v811 = vunpack.c.l.b16 %v622
        %v812 = vunpack.c.h.b16 %v622
        %v813 = vunpack.c.l.b16 %v623
        %v814 = vunpack.c.h.b16 %v623
        %v815 = vunpack.c.l.b16 %v624
        %v816 = vunpack.c.h.b16 %v624
        %v817 = vpack.c.b16 %v693, %v689
        %v818 = vpack.c.b16 %v694, %v690
        %v819 = vpack.c.b16 %v695, %v691
        %v820 = vpack.c.b16 %v696, %v692
        %v821 = vpack.c.b16 %v701, %v697
        %v822 = vpack.c.b16 %v702, %v698
        %v823 = vpack.c.b16 %v703, %v699
        %v824 = vpack.c.b16 %v704, %v700
        %v825 = vpack.c.b16 %v709, %v705
        %v826 = vpack.c.b16 %v710, %v706
        %v827 = vpack.c.b16 %v711, %v707
        %v828 = vpack.c.b16 %v712, %v708
        %v829 = vpack.c.b16 %v717, %v713
        %v830 = vpack.c.b16 %v718, %v714
        %v831 = vpack.c.b16 %v719, %v715
        %v832 = vpack.c.b16 %v720, %v716
        %v833 = vpack.c.b16 %v725, %v721
        %v834 = vpack.c.b16 %v726, %v722
        %v835 = vpack.c.b16 %v727, %v723
        %v836 = vpack.c.b16 %v728, %v724
        %v837 = vpack.c.b16 %v733, %v729
        %v838 = vpack.c.b16 %v734, %v730
        %v839 = vpack.c.b16 %v735, %v731
        %v840 = vpack.c.b16 %v736, %v732
        %v841 = vpack.c.b16 %v741, %v737
        %v842 = vpack.c.b16 %v742, %v738
        %v843 = vpack.c.b16 %v743, %v739
        %v844 = vpack.c.b16 %v744, %v740
        %v845 = vpack.c.b16 %v749, %v745
        %v846 = vpack.c.b16 %v750, %v746
        %v847 = vpack.c.b16 %v751, %v747
        %v848 = vpack.c.b16 %v752, %v748
        %v849 = vpack.c.b16 %v757, %v753
        %v850 = vpack.c.b16 %v758, %v754
        %v851 = vpack.c.b16 %v759, %v755
        %v852 = vpack.c.b16 %v760, %v756
        %v853 = vpack.c.b16 %v765, %v761
        %v854 = vpack.c.b16 %v766, %v762
        %v855 = vpack.c.b16 %v767, %v763
        %v856 = vpack.c.b16 %v768, %v764
        %v857 = vpack.c.b16 %v773, %v769
        %v858 = vpack.c.b16 %v774, %v770
        %v859 = vpack.c.b16 %v775, %v771
        %v860 = vpack.c.b16 %v776, %v772
        %v861 = vpack.c.b16 %v781, %v777
        %v862 = vpack.c.b16 %v782, %v778
        %v863 = vpack.c.b16 %v783, %v779
        %v864 = vpack.c.b16 %v784, %v780
        %v865 = vpack.c.b16 %v789, %v785
        %v866 = vpack.c.b16 %v790, %v786
        %v867 = vpack.c.b16 %v791, %v787
        %v868 = vpack.c.b16 %v792, %v788
        %v869 = vpack.c.b16 %v797, %v793
        %v870 = vpack.c.b16 %v798, %v794
        %v871 = vpack.c.b16 %v799, %v795
        %v872 = vpack.c.b16 %v800, %v796
        %v873 = vpack.c.b16 %v805, %v801
        %v874 = vpack.c.b16 %v806, %v802
        %v875 = vpack.c.b16 %v807, %v803
        %v876 = vpack.c.b16 %v808, %v804
        %v877 = vpack.c.b16 %v813, %v809
        %v878 = vpack.c.b16 %v814, %v810
        %v879 = vpack.c.b16 %v815, %v811
        %v880 = vpack.c.b16 %v816, %v812
        %v1009 = vunpack.c.l.b16 %v465
        %v1010 = vunpack.c.l.b16 %v466
        %v1011 = vunpack.c.l.b16 %v467
        %v1012 = vunpack.c.l.b16 %v468
        %v1013 = vunpack.c.l.b16 %v469
        %v1014 = vunpack.c.l.b16 %v470
        %v1015 = vunpack.c.l.b16 %v471
        %v1016 = vunpack.c.l.b16 %v472
        %v1017 = vunpack.c.l.b16 %v473
        %v1018 = vunpack.c.l.b16 %v474
        %v1019 = vunpack.c.l.b16 %v475
        %v1020 = vunpack.c.l.b16 %v476
        %v1021 = vunpack.c.l.b16 %v477
        %v1022 = vunpack.c.l.b16 %v478
        %v1023 = vunpack.c.l.b16 %v479
        %v1024 = vunpack.c.l.b16 %v480
        %v1025 = vunpack.c.l.b16 %v481
        %v1026 = vunpack.c.l.b16 %v482
        %v1027 = vunpack.c.l.b16 %v483
        %v1028 = vunpack.c.l.b16 %v484
        %v1029 = vunpack.c.l.b16 %v485
        %v1030 = vunpack.c.l.b16 %v486
        %v1031 = vunpack.c.l.b16 %v487
        %v1032 = vunpack.c.l.b16 %v488
        %v1033 = vunpack.c.l.b16 %v489
        %v1034 = vunpack.c.l.b16 %v490
        %v1035 = vunpack.c.l.b16 %v491
        %v1036 = vunpack.c.l.b16 %v492
        %v1037 = vunpack.c.l.b16 %v493
        %v1038 = vunpack.c.l.b16 %v494
        %v1039 = vunpack.c.l.b16 %v495
        %v1040 = vunpack.c.l.b16 %v496
        %v1041 = vunpack.c.l.b16 %v497
        %v1042 = vunpack.c.l.b16 %v498
        %v1043 = vunpack.c.l.b16 %v499
        %v1044 = vunpack.c.l.b16 %v500
        %v1045 = vunpack.c.l.b16 %v501
        %v1046 = vunpack.c.l.b16 %v502
        %v1047 = vunpack.c.l.b16 %v503
        %v1048 = vunpack.c.l.b16 %v504
        %v1049 = vunpack.c.l.b16 %v505
        %v1050 = vunpack.c.l.b16 %v506
        %v1051 = vunpack.c.l.b16 %v507
        %v1052 = vunpack.c.l.b16 %v508
        %v1053 = vunpack.c.l.b16 %v509
        %v1054 = vunpack.c.l.b16 %v510
        %v1055 = vunpack.c.l.b16 %v511
        %v1056 = vunpack.c.l.b16 %v512
        %v1057 = vunpack.c.l.b16 %v513
        %v1058 = vunpack.c.l.b16 %v514
        %v1059 = vunpack.c.l.b16 %v515
        %v1060 = vunpack.c.l.b16 %v516
        %v1061 = vunpack.c.l.b16 %v517
        %v1062 = vunpack.c.l.b16 %v518
        %v1063 = vunpack.c.l.b16 %v519
        %v1064 = vunpack.c.l.b16 %v520
        %v1065 = vunpack.c.l.b16 %v521
        %v1066 = vunpack.c.l.b16 %v522
        %v1067 = vunpack.c.l.b16 %v523
        %v1068 = vunpack.c.l.b16 %v524
        %v1069 = vunpack.c.l.b16 %v525
        %v1070 = vunpack.c.l.b16 %v526
        %v1071 = vunpack.c.l.b16 %v527
        %v1072 = vunpack.c.l.b16 %v528
        %v1073 = vpack.c.b16 %v1010, %v1009
        %v1074 = vpack.c.b16 %v1012, %v1011
        %v1075 = vpack.c.b16 %v1014, %v1013
        %v1076 = vpack.c.b16 %v1016, %v1015
        %v1077 = vpack.c.b16 %v1018, %v1017
        %v1078 = vpack.c.b16 %v1020, %v1019
        %v1079 = vpack.c.b16 %v1022, %v1021
        %v1080 = vpack.c.b16 %v1024, %v1023
        %v1081 = vpack.c.b16 %v1026, %v1025
        %v1082 = vpack.c.b16 %v1028, %v1027
        %v1083 = vpack.c.b16 %v1030, %v1029
        %v1084 = vpack.c.b16 %v1032, %v1031
        %v1085 = vpack.c.b16 %v1034, %v1033
        %v1086 = vpack.c.b16 %v1036, %v1035
        %v1087 = vpack.c.b16 %v1038, %v1037
        %v1088 = vpack.c.b16 %v1040, %v1039
        %v1089 = vpack.c.b16 %v1042, %v1041
        %v1090 = vpack.c.b16 %v1044, %v1043
        %v1091 = vpack.c.b16 %v1046, %v1045
        %v1092 = vpack.c.b16 %v1048, %v1047
        %v1093 = vpack.c.b16 %v1050, %v1049
        %v1094 = vpack.c.b16 %v1052, %v1051
        %v1095 = vpack.c.b16 %v1054, %v1053
        %v1096 = vpack.c.b16 %v1056, %v1055
        %v1097 = vpack.c.b16 %v1058, %v1057
        %v1098 = vpack.c.b16 %v1060, %v1059
        %v1099 = vpack.c.b16 %v1062, %v1061
        %v1100 = vpack.c.b16 %v1064, %v1063
        %v1101 = vpack.c.b16 %v1066, %v1065
        %v1102 = vpack.c.b16 %v1068, %v1067
        %v1103 = vpack.c.b16 %v1070, %v1069
        %v1104 = vpack.c.b16 %v1072, %v1071
        %1137 = vmatprep.subr.bf16.mxu0 0
        %1138 = vmatpush1.bf16.msra.mxu0 %v1073
        %1139 = vmatprep.subr.bf16.mxu0 0
        %1140 = vmatpush1.bf16.msra.mxu0 %v1074
        %1141 = vmatprep.subr.bf16.mxu0 0
        %1142 = vmatpush1.bf16.msra.mxu0 %v1075
        %1143 = vmatprep.subr.bf16.mxu0 0
        %1144 = vmatpush1.bf16.msra.mxu0 %v1076
        %1145 = vmatprep.subr.bf16.mxu0 0
        %1146 = vmatpush1.bf16.msra.mxu0 %v1077
        %1147 = vmatprep.subr.bf16.mxu0 0
        %1148 = vmatpush1.bf16.msra.mxu0 %v1078
        %1149 = vmatprep.subr.bf16.mxu0 0
        %1150 = vmatpush1.bf16.msra.mxu0 %v1079
        %1151 = vmatprep.subr.bf16.mxu0 0
        %1152 = vmatpush1.bf16.msra.mxu0 %v1080
        %1153 = vmatprep.subr.bf16.mxu0 0
        %1154 = vmatpush1.bf16.msra.mxu0 %v1081
        %1155 = vmatprep.subr.bf16.mxu0 0
        %1156 = vmatpush1.bf16.msra.mxu0 %v1082
        %1157 = vmatprep.subr.bf16.mxu0 0
        %1158 = vmatpush1.bf16.msra.mxu0 %v1083
        %1159 = vmatprep.subr.bf16.mxu0 0
        %1160 = vmatpush1.bf16.msra.mxu0 %v1084
        %1161 = vmatprep.subr.bf16.mxu0 0
        %1162 = vmatpush1.bf16.msra.mxu0 %v1085
        %1163 = vmatprep.subr.bf16.mxu0 0
        %1164 = vmatpush1.bf16.msra.mxu0 %v1086
        %1165 = vmatprep.subr.bf16.mxu0 0
        %1166 = vmatpush1.bf16.msra.mxu0 %v1087
        %1167 = vmatprep.subr.bf16.mxu0 0
        %1168 = vmatpush1.bf16.msra.mxu0 %v1088
        %1169 = vmatprep.mubr.bf16.mxu0 %v818
        %1170 = vmatmul.mubr.bf16.gmra.mrb[0].mxu0 %v817
        %v1171 = vpop.f32.mrb[0].mxu0
        %v1172 = vadd.f32 0.0, %v1171
        %v1173 = vpop.f32.mrb[0].mxu0
        %v1174 = vpop.f32.mrb[0].mxu0
        %v1175 = vadd.f32 0.0, %v1174
        %v1176 = vpop.f32.mrb[0].mxu0
        %1177 = vmatprep.mubr.bf16.mxu0 %v822
        %1178 = vmatmul.mubr.bf16.gmra.mrb[0].mxu0 %v821
        %v1179 = vpop.f32.mrb[0].mxu0
        %v1180 = vadd.f32 0.0, %v1179
        %v1181 = vpop.f32.mrb[0].mxu0
        %v1182 = vpop.f32.mrb[0].mxu0
        %v1183 = vadd.f32 0.0, %v1182
        %v1184 = vpop.f32.mrb[0].mxu0
        %1185 = vmatprep.mubr.bf16.mxu0 %v826
        %1186 = vmatmul.mubr.bf16.gmra.mrb[0].mxu0 %v825
        %v1187 = vpop.f32.mrb[0].mxu0
        %v1188 = vadd.f32 0.0, %v1187
        %v1189 = vpop.f32.mrb[0].mxu0
        %v1190 = vpop.f32.mrb[0].mxu0
        %v1191 = vadd.f32 0.0, %v1190
        %v1192 = vpop.f32.mrb[0].mxu0
        %1193 = vmatprep.mubr.bf16.mxu0 %v830
        %1194 = vmatmul.mubr.bf16.gmra.mrb[0].mxu0 %v829
        %v1195 = vpop.f32.mrb[0].mxu0
        %v1196 = vadd.f32 0.0, %v1195
        %v1197 = vpop.f32.mrb[0].mxu0
        %v1198 = vpop.f32.mrb[0].mxu0
        %v1199 = vadd.f32 0.0, %v1198
        %v1200 = vpop.f32.mrb[0].mxu0
        %1201 = vmatprep.mubr.bf16.mxu0 %v834
        %1202 = vmatmul.mubr.bf16.gmra.mrb[0].mxu0 %v833
        %v1203 = vpop.f32.mrb[0].mxu0
        %v1204 = vadd.f32 0.0, %v1203
        %v1205 = vpop.f32.mrb[0].mxu0
        %v1206 = vpop.f32.mrb[0].mxu0
        %v1207 = vadd.f32 0.0, %v1206
        %v1208 = vpop.f32.mrb[0].mxu0
        %1209 = vmatprep.mubr.bf16.mxu0 %v838
        %1210 = vmatmul.mubr.bf16.gmra.mrb[0].mxu0 %v837
        %v1211 = vpop.f32.mrb[0].mxu0
        %v1212 = vadd.f32 0.0, %v1211
        %v1213 = vpop.f32.mrb[0].mxu0
        %v1214 = vpop.f32.mrb[0].mxu0
        %v1215 = vadd.f32 0.0, %v1214
        %v1216 = vpop.f32.mrb[0].mxu0
        %1217 = vmatprep.mubr.bf16.mxu0 %v842
        %1218 = vmatmul.mubr.bf16.gmra.mrb[0].mxu0 %v841
        %v1219 = vpop.f32.mrb[0].mxu0
        %v1220 = vadd.f32 0.0, %v1219
        %v1221 = vpop.f32.mrb[0].mxu0
        %v1222 = vpop.f32.mrb[0].mxu0
        %v1223 = vadd.f32 0.0, %v1222
        %v1224 = vpop.f32.mrb[0].mxu0
        %1225 = vmatprep.mubr.bf16.mxu0 %v846
        %1226 = vmatmul.mubr.bf16.gmra.mrb[0].mxu0 %v845
        %v1227 = vpop.f32.mrb[0].mxu0
        %v1228 = vadd.f32 0.0, %v1227
        %v1229 = vpop.f32.mrb[0].mxu0
        %v1230 = vpop.f32.mrb[0].mxu0
        %v1231 = vadd.f32 0.0, %v1230
        %v1232 = vpop.f32.mrb[0].mxu0
        %1233 = vmatprep.mubr.bf16.mxu0 %v850
        %1234 = vmatmul.mubr.bf16.gmra.mrb[0].mxu0 %v849
        %v1235 = vpop.f32.mrb[0].mxu0
        %v1236 = vadd.f32 0.0, %v1235
        %v1237 = vpop.f32.mrb[0].mxu0
        %v1238 = vpop.f32.mrb[0].mxu0
        %v1239 = vadd.f32 0.0, %v1238
        %v1240 = vpop.f32.mrb[0].mxu0
        %1241 = vmatprep.mubr.bf16.mxu0 %v854
        %1242 = vmatmul.mubr.bf16.gmra.mrb[0].mxu0 %v853
        %v1243 = vpop.f32.mrb[0].mxu0
        %v1244 = vadd.f32 0.0, %v1243
        %v1245 = vpop.f32.mrb[0].mxu0
        %v1246 = vpop.f32.mrb[0].mxu0
        %v1247 = vadd.f32 0.0, %v1246
        %v1248 = vpop.f32.mrb[0].mxu0
        %1249 = vmatprep.mubr.bf16.mxu0 %v858
        %1250 = vmatmul.mubr.bf16.gmra.mrb[0].mxu0 %v857
        %v1251 = vpop.f32.mrb[0].mxu0
        %v1252 = vadd.f32 0.0, %v1251
        %v1253 = vpop.f32.mrb[0].mxu0
        %v1254 = vpop.f32.mrb[0].mxu0
        %v1255 = vadd.f32 0.0, %v1254
        %v1256 = vpop.f32.mrb[0].mxu0
        %1257 = vmatprep.mubr.bf16.mxu0 %v862
        %1258 = vmatmul.mubr.bf16.gmra.mrb[0].mxu0 %v861
        %v1259 = vpop.f32.mrb[0].mxu0
        %v1260 = vadd.f32 0.0, %v1259
        %v1261 = vpop.f32.mrb[0].mxu0
        %v1262 = vpop.f32.mrb[0].mxu0
        %v1263 = vadd.f32 0.0, %v1262
        %v1264 = vpop.f32.mrb[0].mxu0
        %1265 = vmatprep.mubr.bf16.mxu0 %v866
        %1266 = vmatmul.mubr.bf16.gmra.mrb[0].mxu0 %v865
        %v1267 = vpop.f32.mrb[0].mxu0
        %v1268 = vadd.f32 0.0, %v1267
        %v1269 = vpop.f32.mrb[0].mxu0
        %v1270 = vpop.f32.mrb[0].mxu0
        %v1271 = vadd.f32 0.0, %v1270
        %v1272 = vpop.f32.mrb[0].mxu0
        %1273 = vmatprep.mubr.bf16.mxu0 %v870
        %1274 = vmatmul.mubr.bf16.gmra.mrb[0].mxu0 %v869
        %v1275 = vpop.f32.mrb[0].mxu0
        %v1276 = vadd.f32 0.0, %v1275
        %v1277 = vpop.f32.mrb[0].mxu0
        %v1278 = vpop.f32.mrb[0].mxu0
        %v1279 = vadd.f32 0.0, %v1278
        %v1280 = vpop.f32.mrb[0].mxu0
        %1281 = vmatprep.mubr.bf16.mxu0 %v874
        %1282 = vmatmul.mubr.bf16.gmra.mrb[0].mxu0 %v873
        %v1283 = vpop.f32.mrb[0].mxu0
        %v1284 = vadd.f32 0.0, %v1283
        %v1285 = vpop.f32.mrb[0].mxu0
        %v1286 = vpop.f32.mrb[0].mxu0
        %v1287 = vadd.f32 0.0, %v1286
        %v1288 = vpop.f32.mrb[0].mxu0
        %1289 = vmatprep.mubr.bf16.mxu0 %v878
        %1290 = vmatmul.mubr.bf16.gmra.mrb[0].mxu0 %v877
        %v1291 = vpop.f32.mrb[0].mxu0
        %v1292 = vadd.f32 0.0, %v1291
        %v1293 = vpop.f32.mrb[0].mxu0
        %v1294 = vpop.f32.mrb[0].mxu0
        %v1295 = vadd.f32 0.0, %v1294
        %v1296 = vpop.f32.mrb[0].mxu0
        %1297 = vdwg.mxu0
        %1298 = vmatprep.subr.bf16.mxu0 0
        %1299 = vmatpush1.bf16.msra.mxu0 %v1089
        %1300 = vmatprep.subr.bf16.mxu0 0
        %1301 = vmatpush1.bf16.msra.mxu0 %v1090
        %1302 = vmatprep.subr.bf16.mxu0 0
        %1303 = vmatpush1.bf16.msra.mxu0 %v1091
        %1304 = vmatprep.subr.bf16.mxu0 0
        %1305 = vmatpush1.bf16.msra.mxu0 %v1092
        %1306 = vmatprep.subr.bf16.mxu0 0
        %1307 = vmatpush1.bf16.msra.mxu0 %v1093
        %1308 = vmatprep.subr.bf16.mxu0 0
        %1309 = vmatpush1.bf16.msra.mxu0 %v1094
        %1310 = vmatprep.subr.bf16.mxu0 0
        %1311 = vmatpush1.bf16.msra.mxu0 %v1095
        %1312 = vmatprep.subr.bf16.mxu0 0
        %1313 = vmatpush1.bf16.msra.mxu0 %v1096
        %1314 = vmatprep.subr.bf16.mxu0 0
        %1315 = vmatpush1.bf16.msra.mxu0 %v1097
        %1316 = vmatprep.subr.bf16.mxu0 0
        %1317 = vmatpush1.bf16.msra.mxu0 %v1098
        %1318 = vmatprep.subr.bf16.mxu0 0
        %1319 = vmatpush1.bf16.msra.mxu0 %v1099
        %1320 = vmatprep.subr.bf16.mxu0 0
        %1321 = vmatpush1.bf16.msra.mxu0 %v1100
        %1322 = vmatprep.subr.bf16.mxu0 0
        %1323 = vmatpush1.bf16.msra.mxu0 %v1101
        %1324 = vmatprep.subr.bf16.mxu0 0
        %1325 = vmatpush1.bf16.msra.mxu0 %v1102
        %1326 = vmatprep.subr.bf16.mxu0 0
        %1327 = vmatpush1.bf16.msra.mxu0 %v1103
        %1328 = vmatprep.subr.bf16.mxu0 0
        %1329 = vmatpush1.bf16.msra.mxu0 %v1104
        %1330 = vmatprep.mubr.bf16.mxu0 %v820
        %1331 = vmatmul.mubr.bf16.gmra.mrb[0].mxu0 %v819
        %v1332 = vpop.f32.mrb[0].mxu0
        %v1333 = vadd.f32 %v1172, %v1332
        %v1334 = vpop.f32.mrb[0].mxu0
        %v1335 = vpop.f32.mrb[0].mxu0
        %v1336 = vadd.f32 %v1175, %v1335
        %v1337 = vpop.f32.mrb[0].mxu0
        %1338 = vmatprep.mubr.bf16.mxu0 %v824
        %1339 = vmatmul.mubr.bf16.gmra.mrb[0].mxu0 %v823
        %v1340 = vpop.f32.mrb[0].mxu0
        %v1341 = vadd.f32 %v1180, %v1340
        %v1342 = vpop.f32.mrb[0].mxu0
        %v1343 = vpop.f32.mrb[0].mxu0
        %v1344 = vadd.f32 %v1183, %v1343
        %v1345 = vpop.f32.mrb[0].mxu0
        %1346 = vmatprep.mubr.bf16.mxu0 %v828
        %1347 = vmatmul.mubr.bf16.gmra.mrb[0].mxu0 %v827
        %v1348 = vpop.f32.mrb[0].mxu0
        %v1349 = vadd.f32 %v1188, %v1348
        %v1350 = vpop.f32.mrb[0].mxu0
        %v1351 = vpop.f32.mrb[0].mxu0
        %v1352 = vadd.f32 %v1191, %v1351
        %v1353 = vpop.f32.mrb[0].mxu0
        %1354 = vmatprep.mubr.bf16.mxu0 %v832
        %1355 = vmatmul.mubr.bf16.gmra.mrb[0].mxu0 %v831
        %v1356 = vpop.f32.mrb[0].mxu0
        %v1357 = vadd.f32 %v1196, %v1356
        %v1358 = vpop.f32.mrb[0].mxu0
        %v1359 = vpop.f32.mrb[0].mxu0
        %v1360 = vadd.f32 %v1199, %v1359
        %v1361 = vpop.f32.mrb[0].mxu0
        %1362 = vmatprep.mubr.bf16.mxu0 %v836
        %1363 = vmatmul.mubr.bf16.gmra.mrb[0].mxu0 %v835
        %v1364 = vpop.f32.mrb[0].mxu0
        %v1365 = vadd.f32 %v1204, %v1364
        %v1366 = vpop.f32.mrb[0].mxu0
        %v1367 = vpop.f32.mrb[0].mxu0
        %v1368 = vadd.f32 %v1207, %v1367
        %v1369 = vpop.f32.mrb[0].mxu0
        %1370 = vmatprep.mubr.bf16.mxu0 %v840
        %1371 = vmatmul.mubr.bf16.gmra.mrb[0].mxu0 %v839
        %v1372 = vpop.f32.mrb[0].mxu0
        %v1373 = vadd.f32 %v1212, %v1372
        %v1374 = vpop.f32.mrb[0].mxu0
        %v1375 = vpop.f32.mrb[0].mxu0
        %v1376 = vadd.f32 %v1215, %v1375
        %v1377 = vpop.f32.mrb[0].mxu0
        %1378 = vmatprep.mubr.bf16.mxu0 %v844
        %1379 = vmatmul.mubr.bf16.gmra.mrb[0].mxu0 %v843
        %v1380 = vpop.f32.mrb[0].mxu0
        %v1381 = vadd.f32 %v1220, %v1380
        %v1382 = vpop.f32.mrb[0].mxu0
        %v1383 = vpop.f32.mrb[0].mxu0
        %v1384 = vadd.f32 %v1223, %v1383
        %v1385 = vpop.f32.mrb[0].mxu0
        %1386 = vmatprep.mubr.bf16.mxu0 %v848
        %1387 = vmatmul.mubr.bf16.gmra.mrb[0].mxu0 %v847
        %v1388 = vpop.f32.mrb[0].mxu0
        %v1389 = vadd.f32 %v1228, %v1388
        %v1390 = vpop.f32.mrb[0].mxu0
        %v1391 = vpop.f32.mrb[0].mxu0
        %v1392 = vadd.f32 %v1231, %v1391
        %v1393 = vpop.f32.mrb[0].mxu0
        %1394 = vmatprep.mubr.bf16.mxu0 %v852
        %1395 = vmatmul.mubr.bf16.gmra.mrb[0].mxu0 %v851
        %v1396 = vpop.f32.mrb[0].mxu0
        %v1397 = vadd.f32 %v1236, %v1396
        %v1398 = vpop.f32.mrb[0].mxu0
        %v1399 = vpop.f32.mrb[0].mxu0
        %v1400 = vadd.f32 %v1239, %v1399
        %v1401 = vpop.f32.mrb[0].mxu0
        %1402 = vmatprep.mubr.bf16.mxu0 %v856
        %1403 = vmatmul.mubr.bf16.gmra.mrb[0].mxu0 %v855
        %v1404 = vpop.f32.mrb[0].mxu0
        %v1405 = vadd.f32 %v1244, %v1404
        %v1406 = vpop.f32.mrb[0].mxu0
        %v1407 = vpop.f32.mrb[0].mxu0
        %v1408 = vadd.f32 %v1247, %v1407
        %v1409 = vpop.f32.mrb[0].mxu0
        %1410 = vmatprep.mubr.bf16.mxu0 %v860
        %1411 = vmatmul.mubr.bf16.gmra.mrb[0].mxu0 %v859
        %v1412 = vpop.f32.mrb[0].mxu0
        %v1413 = vadd.f32 %v1252, %v1412
        %v1414 = vpop.f32.mrb[0].mxu0
        %v1415 = vpop.f32.mrb[0].mxu0
        %v1416 = vadd.f32 %v1255, %v1415
        %v1417 = vpop.f32.mrb[0].mxu0
        %1418 = vmatprep.mubr.bf16.mxu0 %v864
        %1419 = vmatmul.mubr.bf16.gmra.mrb[0].mxu0 %v863
        %v1420 = vpop.f32.mrb[0].mxu0
        %v1421 = vadd.f32 %v1260, %v1420
        %v1422 = vpop.f32.mrb[0].mxu0
        %v1423 = vpop.f32.mrb[0].mxu0
        %v1424 = vadd.f32 %v1263, %v1423
        %v1425 = vpop.f32.mrb[0].mxu0
        %1426 = vmatprep.mubr.bf16.mxu0 %v868
        %1427 = vmatmul.mubr.bf16.gmra.mrb[0].mxu0 %v867
        %v1428 = vpop.f32.mrb[0].mxu0
        %v1429 = vadd.f32 %v1268, %v1428
        %v1430 = vpop.f32.mrb[0].mxu0
        %v1431 = vpop.f32.mrb[0].mxu0
        %v1432 = vadd.f32 %v1271, %v1431
        %v1433 = vpop.f32.mrb[0].mxu0
        %1434 = vmatprep.mubr.bf16.mxu0 %v872
        %1435 = vmatmul.mubr.bf16.gmra.mrb[0].mxu0 %v871
        %v1436 = vpop.f32.mrb[0].mxu0
        %v1437 = vadd.f32 %v1276, %v1436
        %v1438 = vpop.f32.mrb[0].mxu0
        %v1439 = vpop.f32.mrb[0].mxu0
        %v1440 = vadd.f32 %v1279, %v1439
        %v1441 = vpop.f32.mrb[0].mxu0
        %1442 = vmatprep.mubr.bf16.mxu0 %v876
        %1443 = vmatmul.mubr.bf16.gmra.mrb[0].mxu0 %v875
        %v1444 = vpop.f32.mrb[0].mxu0
        %v1445 = vadd.f32 %v1284, %v1444
        %v1446 = vpop.f32.mrb[0].mxu0
        %v1447 = vpop.f32.mrb[0].mxu0
        %v1448 = vadd.f32 %v1287, %v1447
        %v1449 = vpop.f32.mrb[0].mxu0
        %1450 = vmatprep.mubr.bf16.mxu0 %v880
        %1451 = vmatmul.mubr.bf16.gmra.mrb[0].mxu0 %v879
        %v1452 = vpop.f32.mrb[0].mxu0
        %v1453 = vadd.f32 %v1292, %v1452
        %v1454 = vpop.f32.mrb[0].mxu0
        %v1455 = vpop.f32.mrb[0].mxu0
        %v1456 = vadd.f32 %v1295, %v1455
        %v1457 = vpop.f32.mrb[0].mxu0
        %1458 = vdwg.mxu0
        %v1459 = vadd.f32 %v529, %v1333
        %v1460 = vadd.f32 %v530, %v1336
        %v1461 = vadd.f32 %v531, %v1341
        %v1462 = vadd.f32 %v532, %v1344
        %v1463 = vadd.f32 %v533, %v1349
        %v1464 = vadd.f32 %v534, %v1352
        %v1465 = vadd.f32 %v535, %v1357
        %v1466 = vadd.f32 %v536, %v1360
        %v1467 = vadd.f32 %v537, %v1365
        %v1468 = vadd.f32 %v538, %v1368
        %v1469 = vadd.f32 %v539, %v1373
        %v1470 = vadd.f32 %v540, %v1376
        %v1471 = vadd.f32 %v541, %v1381
        %v1472 = vadd.f32 %v542, %v1384
        %v1473 = vadd.f32 %v543, %v1389
        %v1474 = vadd.f32 %v544, %v1392
        %v1475 = vadd.f32 %v545, %v1397
        %v1476 = vadd.f32 %v546, %v1400
        %v1477 = vadd.f32 %v547, %v1405
        %v1478 = vadd.f32 %v548, %v1408
        %v1479 = vadd.f32 %v549, %v1413
        %v1480 = vadd.f32 %v550, %v1416
        %v1481 = vadd.f32 %v551, %v1421
        %v1482 = vadd.f32 %v552, %v1424
        %v1483 = vadd.f32 %v553, %v1429
        %v1484 = vadd.f32 %v554, %v1432
        %v1485 = vadd.f32 %v555, %v1437
        %v1486 = vadd.f32 %v556, %v1440
        %v1487 = vadd.f32 %v557, %v1445
        %v1488 = vadd.f32 %v558, %v1448
        %v1489 = vadd.f32 %v559, %v1453
        %v1490 = vadd.f32 %v560, %v1456
        %1491 = vst [vmem:[%s410] sm:$0xff] %v1459
        %1492 = vst [vmem:[%s410 + $0x8] sm:$0xff] %v1460
        %1493 = vst [vmem:[%s410 + $0x10] sm:$0xff] %v1461
        %1494 = vst [vmem:[%s410 + $0x18] sm:$0xff] %v1462
        %1495 = vst [vmem:[%s410 + $0x20] sm:$0xff] %v1463
        %1496 = vst [vmem:[%s410 + $0x28] sm:$0xff] %v1464
        %1497 = vst [vmem:[%s410 + $0x30] sm:$0xff] %v1465
        %1498 = vst [vmem:[%s410 + $0x38] sm:$0xff] %v1466
        %1499 = vst [vmem:[%s410 + $0x40] sm:$0xff] %v1467
        %1500 = vst [vmem:[%s410 + $0x48] sm:$0xff] %v1468
        %1501 = vst [vmem:[%s410 + $0x50] sm:$0xff] %v1469
        %1502 = vst [vmem:[%s410 + $0x58] sm:$0xff] %v1470
        %1503 = vst [vmem:[%s410 + $0x60] sm:$0xff] %v1471
        %1504 = vst [vmem:[%s410 + $0x68] sm:$0xff] %v1472
        %1505 = vst [vmem:[%s410 + $0x70] sm:$0xff] %v1473
        %1506 = vst [vmem:[%s410 + $0x78] sm:$0xff] %v1474
        %1507 = vst [vmem:[%s410 + $0x80] sm:$0xff] %v1475
        %1508 = vst [vmem:[%s410 + $0x88] sm:$0xff] %v1476
        %1509 = vst [vmem:[%s410 + $0x90] sm:$0xff] %v1477
        %1510 = vst [vmem:[%s410 + $0x98] sm:$0xff] %v1478
        %1511 = vst [vmem:[%s410 + $0xa0] sm:$0xff] %v1479
        %1512 = vst [vmem:[%s410 + $0xa8] sm:$0xff] %v1480
        %1513 = vst [vmem:[%s410 + $0xb0] sm:$0xff] %v1481
        %1514 = vst [vmem:[%s410 + $0xb8] sm:$0xff] %v1482
        %1515 = vst [vmem:[%s410 + $0xc0] sm:$0xff] %v1483
        %1516 = vst [vmem:[%s410 + $0xc8] sm:$0xff] %v1484
        %1517 = vst [vmem:[%s410 + $0xd0] sm:$0xff] %v1485
        %1518 = vst [vmem:[%s410 + $0xd8] sm:$0xff] %v1486
        %1519 = vst [vmem:[%s410 + $0xe0] sm:$0xff] %v1487
        %1520 = vst [vmem:[%s410 + $0xe8] sm:$0xff] %v1488
        %1521 = vst [vmem:[%s410 + $0xf0] sm:$0xff] %v1489
        %1522 = vst [vmem:[%s410 + $0xf8] sm:$0xff] %v1490
        %p1523 = scmp.eq.s32.totalorder %s35, 1
        // Predicated region
        $region73: #{tpu_custom_call.1} parent=43 // pred_check
          %p1524 = pneg %p1523
        $region74: #{tpu_custom_call.1} parent=43 // pred_check_branch
          %1526 = sbr.rel (%p1524) target = $region76
        $region75: #{tpu_custom_call.1} parent=43 // pred_region
          %v1527 = vld [vmem:[%s410] sm:$0xff]
          %v1528 = vld [vmem:[%s410 + $0x8] sm:$0xff]
          %v1529 = vld [vmem:[%s410 + $0x10] sm:$0xff]
          %v1530 = vld [vmem:[%s410 + $0x18] sm:$0xff]
          %v1531 = vld [vmem:[%s410 + $0x20] sm:$0xff]
          %v1532 = vld [vmem:[%s410 + $0x28] sm:$0xff]
          %v1533 = vld [vmem:[%s410 + $0x30] sm:$0xff]
          %v1534 = vld [vmem:[%s410 + $0x38] sm:$0xff]
          %v1535 = vld [vmem:[%s410 + $0x40] sm:$0xff]
          %v1536 = vld [vmem:[%s410 + $0x48] sm:$0xff]
          %v1537 = vld [vmem:[%s410 + $0x50] sm:$0xff]
          %v1538 = vld [vmem:[%s410 + $0x58] sm:$0xff]
          %v1539 = vld [vmem:[%s410 + $0x60] sm:$0xff]
          %v1540 = vld [vmem:[%s410 + $0x68] sm:$0xff]
          %v1541 = vld [vmem:[%s410 + $0x70] sm:$0xff]
          %v1542 = vld [vmem:[%s410 + $0x78] sm:$0xff]
          %v1543 = vld [vmem:[%s410 + $0x80] sm:$0xff]
          %v1544 = vld [vmem:[%s410 + $0x88] sm:$0xff]
          %v1545 = vld [vmem:[%s410 + $0x90] sm:$0xff]
          %v1546 = vld [vmem:[%s410 + $0x98] sm:$0xff]
          %v1547 = vld [vmem:[%s410 + $0xa0] sm:$0xff]
          %v1548 = vld [vmem:[%s410 + $0xa8] sm:$0xff]
          %v1549 = vld [vmem:[%s410 + $0xb0] sm:$0xff]
          %v1550 = vld [vmem:[%s410 + $0xb8] sm:$0xff]
          %v1551 = vld [vmem:[%s410 + $0xc0] sm:$0xff]
          %v1552 = vld [vmem:[%s410 + $0xc8] sm:$0xff]
          %v1553 = vld [vmem:[%s410 + $0xd0] sm:$0xff]
          %v1554 = vld [vmem:[%s410 + $0xd8] sm:$0xff]
          %v1555 = vld [vmem:[%s410 + $0xe0] sm:$0xff]
          %v1556 = vld [vmem:[%s410 + $0xe8] sm:$0xff]
          %v1557 = vld [vmem:[%s410 + $0xf0] sm:$0xff]
          %v1558 = vld [vmem:[%s410 + $0xf8] sm:$0xff]
          %v1559 = vmax.f32 %v1527, 1.0
          %v1560 = vmax.f32 %v1528, 1.0
          %v1561 = vmax.f32 %v1529, 1.0
          %v1562 = vmax.f32 %v1530, 1.0
          %v1563 = vmax.f32 %v1531, 1.0
          %v1564 = vmax.f32 %v1532, 1.0
          %v1565 = vmax.f32 %v1533, 1.0
          %v1566 = vmax.f32 %v1534, 1.0
          %v1567 = vmax.f32 %v1535, 1.0
          %v1568 = vmax.f32 %v1536, 1.0
          %v1569 = vmax.f32 %v1537, 1.0
          %v1570 = vmax.f32 %v1538, 1.0
          %v1571 = vmax.f32 %v1539, 1.0
          %v1572 = vmax.f32 %v1540, 1.0
          %v1573 = vmax.f32 %v1541, 1.0
          %v1574 = vmax.f32 %v1542, 1.0
          %v1575 = vmax.f32 %v1543, 1.0
          %v1576 = vmax.f32 %v1544, 1.0
          %v1577 = vmax.f32 %v1545, 1.0
          %v1578 = vmax.f32 %v1546, 1.0
          %v1579 = vmax.f32 %v1547, 1.0
          %v1580 = vmax.f32 %v1548, 1.0
          %v1581 = vmax.f32 %v1549, 1.0
          %v1582 = vmax.f32 %v1550, 1.0
          %v1583 = vmax.f32 %v1551, 1.0
          %v1584 = vmax.f32 %v1552, 1.0
          %v1585 = vmax.f32 %v1553, 1.0
          %v1586 = vmax.f32 %v1554, 1.0
          %v1587 = vmax.f32 %v1555, 1.0
          %v1588 = vmax.f32 %v1556, 1.0
          %v1589 = vmax.f32 %v1557, 1.0
          %v1590 = vmax.f32 %v1558, 1.0
          %1592 = vset.pattern.permute.xlu0 64
          %1593 = vperm.xlu0 %1592, %v1559
          %v1594 = vpop.permute.xlu0 %1593
          %1597 = vset.pattern.permute.xlu0 64
          %1598 = vperm.xlu0 %1597, %v1560
          %v1599 = vpop.permute.xlu0 %1598
          %1602 = vset.pattern.permute.xlu0 64
          %1603 = vperm.xlu0 %1602, %v1561
          %v1604 = vpop.permute.xlu0 %1603
          %1607 = vset.pattern.permute.xlu0 64
          %1608 = vperm.xlu0 %1607, %v1562
          %v1609 = vpop.permute.xlu0 %1608
          %1612 = vset.pattern.permute.xlu0 64
          %1613 = vperm.xlu0 %1612, %v1563
          %v1614 = vpop.permute.xlu0 %1613
          %1617 = vset.pattern.permute.xlu0 64
          %1618 = vperm.xlu0 %1617, %v1564
          %v1619 = vpop.permute.xlu0 %1618
          %1622 = vset.pattern.permute.xlu0 64
          %1623 = vperm.xlu0 %1622, %v1565
          %v1624 = vpop.permute.xlu0 %1623
          %1627 = vset.pattern.permute.xlu0 64
          %1628 = vperm.xlu0 %1627, %v1566
          %v1629 = vpop.permute.xlu0 %1628
          %1632 = vset.pattern.permute.xlu0 64
          %1633 = vperm.xlu0 %1632, %v1567
          %v1634 = vpop.permute.xlu0 %1633
          %1637 = vset.pattern.permute.xlu0 64
          %1638 = vperm.xlu0 %1637, %v1568
          %v1639 = vpop.permute.xlu0 %1638
          %1642 = vset.pattern.permute.xlu0 64
          %1643 = vperm.xlu0 %1642, %v1569
          %v1644 = vpop.permute.xlu0 %1643
          %1647 = vset.pattern.permute.xlu0 64
          %1648 = vperm.xlu0 %1647, %v1570
          %v1649 = vpop.permute.xlu0 %1648
          %1652 = vset.pattern.permute.xlu0 64
          %1653 = vperm.xlu0 %1652, %v1571
          %v1654 = vpop.permute.xlu0 %1653
          %1657 = vset.pattern.permute.xlu0 64
          %1658 = vperm.xlu0 %1657, %v1572
          %v1659 = vpop.permute.xlu0 %1658
          %1662 = vset.pattern.permute.xlu0 64
          %1663 = vperm.xlu0 %1662, %v1573
          %v1664 = vpop.permute.xlu0 %1663
          %1667 = vset.pattern.permute.xlu0 64
          %1668 = vperm.xlu0 %1667, %v1574
          %v1669 = vpop.permute.xlu0 %1668
          %1672 = vset.pattern.permute.xlu0 64
          %1673 = vperm.xlu0 %1672, %v1575
          %v1674 = vpop.permute.xlu0 %1673
          %1677 = vset.pattern.permute.xlu0 64
          %1678 = vperm.xlu0 %1677, %v1576
          %v1679 = vpop.permute.xlu0 %1678
          %1682 = vset.pattern.permute.xlu0 64
          %1683 = vperm.xlu0 %1682, %v1577
          %v1684 = vpop.permute.xlu0 %1683
          %1687 = vset.pattern.permute.xlu0 64
          %1688 = vperm.xlu0 %1687, %v1578
          %v1689 = vpop.permute.xlu0 %1688
          %1692 = vset.pattern.permute.xlu0 64
          %1693 = vperm.xlu0 %1692, %v1579
          %v1694 = vpop.permute.xlu0 %1693
          %1697 = vset.pattern.permute.xlu0 64
          %1698 = vperm.xlu0 %1697, %v1580
          %v1699 = vpop.permute.xlu0 %1698
          %1702 = vset.pattern.permute.xlu0 64
          %1703 = vperm.xlu0 %1702, %v1581
          %v1704 = vpop.permute.xlu0 %1703
          %1707 = vset.pattern.permute.xlu0 64
          %1708 = vperm.xlu0 %1707, %v1582
          %v1709 = vpop.permute.xlu0 %1708
          %1712 = vset.pattern.permute.xlu0 64
          %1713 = vperm.xlu0 %1712, %v1583
          %v1714 = vpop.permute.xlu0 %1713
          %1717 = vset.pattern.permute.xlu0 64
          %1718 = vperm.xlu0 %1717, %v1584
          %v1719 = vpop.permute.xlu0 %1718
          %1722 = vset.pattern.permute.xlu0 64
          %1723 = vperm.xlu0 %1722, %v1585
          %v1724 = vpop.permute.xlu0 %1723
          %1727 = vset.pattern.permute.xlu0 64
          %1728 = vperm.xlu0 %1727, %v1586
          %v1729 = vpop.permute.xlu0 %1728
          %1732 = vset.pattern.permute.xlu0 64
          %1733 = vperm.xlu0 %1732, %v1587
          %v1734 = vpop.permute.xlu0 %1733
          %1737 = vset.pattern.permute.xlu0 64
          %1738 = vperm.xlu0 %1737, %v1588
          %v1739 = vpop.permute.xlu0 %1738
          %1742 = vset.pattern.permute.xlu0 64
          %1743 = vperm.xlu0 %1742, %v1589
          %v1744 = vpop.permute.xlu0 %1743
          %1747 = vset.pattern.permute.xlu0 64
          %1748 = vperm.xlu0 %1747, %v1590
          %v1749 = vpop.permute.xlu0 %1748
          %v1751 = vrcp.pop %v1594
          %v1752 = vmul.f32 %v1527, %v1751
          %v1753 = vrcp.pop %v1599
          %v1754 = vmul.f32 %v1528, %v1753
          %v1755 = vrcp.pop %v1604
          %v1756 = vmul.f32 %v1529, %v1755
          %v1757 = vrcp.pop %v1609
          %v1758 = vmul.f32 %v1530, %v1757
          %v1759 = vrcp.pop %v1614
          %v1760 = vmul.f32 %v1531, %v1759
          %v1761 = vrcp.pop %v1619
          %v1762 = vmul.f32 %v1532, %v1761
          %v1763 = vrcp.pop %v1624
          %v1764 = vmul.f32 %v1533, %v1763
          %v1765 = vrcp.pop %v1629
          %v1766 = vmul.f32 %v1534, %v1765
          %v1767 = vrcp.pop %v1634
          %v1768 = vmul.f32 %v1535, %v1767
          %v1769 = vrcp.pop %v1639
          %v1770 = vmul.f32 %v1536, %v1769
          %v1771 = vrcp.pop %v1644
          %v1772 = vmul.f32 %v1537, %v1771
          %v1773 = vrcp.pop %v1649
          %v1774 = vmul.f32 %v1538, %v1773
          %v1775 = vrcp.pop %v1654
          %v1776 = vmul.f32 %v1539, %v1775
          %v1777 = vrcp.pop %v1659
          %v1778 = vmul.f32 %v1540, %v1777
          %v1779 = vrcp.pop %v1664
          %v1780 = vmul.f32 %v1541, %v1779
          %v1781 = vrcp.pop %v1669
          %v1782 = vmul.f32 %v1542, %v1781
          %v1783 = vrcp.pop %v1674
          %v1784 = vmul.f32 %v1543, %v1783
          %v1785 = vrcp.pop %v1679
          %v1786 = vmul.f32 %v1544, %v1785
          %v1787 = vrcp.pop %v1684
          %v1788 = vmul.f32 %v1545, %v1787
          %v1789 = vrcp.pop %v1689
          %v1790 = vmul.f32 %v1546, %v1789
          %v1791 = vrcp.pop %v1694
          %v1792 = vmul.f32 %v1547, %v1791
          %v1793 = vrcp.pop %v1699
          %v1794 = vmul.f32 %v1548, %v1793
          %v1795 = vrcp.pop %v1704
          %v1796 = vmul.f32 %v1549, %v1795
          %v1797 = vrcp.pop %v1709
          %v1798 = vmul.f32 %v1550, %v1797
          %v1799 = vrcp.pop %v1714
          %v1800 = vmul.f32 %v1551, %v1799
          %v1801 = vrcp.pop %v1719
          %v1802 = vmul.f32 %v1552, %v1801
          %v1803 = vrcp.pop %v1724
          %v1804 = vmul.f32 %v1553, %v1803
          %v1805 = vrcp.pop %v1729
          %v1806 = vmul.f32 %v1554, %v1805
          %v1807 = vrcp.pop %v1734
          %v1808 = vmul.f32 %v1555, %v1807
          %v1809 = vrcp.pop %v1739
          %v1810 = vmul.f32 %v1556, %v1809
          %v1811 = vrcp.pop %v1744
          %v1812 = vmul.f32 %v1557, %v1811
          %v1813 = vrcp.pop %v1749
          %v1814 = vmul.f32 %v1558, %v1813
          %v1815 = vld [vmem:[%s365] sm:$0xff]
          %v1816 = vld [vmem:[%s365 + $0x8] sm:$0xff]
          %v1817 = vld [vmem:[%s365 + $0x10] sm:$0xff]
          %v1818 = vld [vmem:[%s365 + $0x18] sm:$0xff]
          %v1819 = vld [vmem:[%s365 + $0x20] sm:$0xff]
          %v1820 = vld [vmem:[%s365 + $0x28] sm:$0xff]
          %v1821 = vld [vmem:[%s365 + $0x30] sm:$0xff]
          %v1822 = vld [vmem:[%s365 + $0x38] sm:$0xff]
          %v1823 = vld [vmem:[%s365 + $0x40] sm:$0xff]
          %v1824 = vld [vmem:[%s365 + $0x48] sm:$0xff]
          %v1825 = vld [vmem:[%s365 + $0x50] sm:$0xff]
          %v1826 = vld [vmem:[%s365 + $0x58] sm:$0xff]
          %v1827 = vld [vmem:[%s365 + $0x60] sm:$0xff]
          %v1828 = vld [vmem:[%s365 + $0x68] sm:$0xff]
          %v1829 = vld [vmem:[%s365 + $0x70] sm:$0xff]
          %v1830 = vld [vmem:[%s365 + $0x78] sm:$0xff]
          %v1831 = vld [vmem:[%s365 + $0x80] sm:$0xff]
          %v1832 = vld [vmem:[%s365 + $0x88] sm:$0xff]
          %v1833 = vld [vmem:[%s365 + $0x90] sm:$0xff]
          %v1834 = vld [vmem:[%s365 + $0x98] sm:$0xff]
          %v1835 = vld [vmem:[%s365 + $0xa0] sm:$0xff]
          %v1836 = vld [vmem:[%s365 + $0xa8] sm:$0xff]
          %v1837 = vld [vmem:[%s365 + $0xb0] sm:$0xff]
          %v1838 = vld [vmem:[%s365 + $0xb8] sm:$0xff]
          %v1839 = vld [vmem:[%s365 + $0xc0] sm:$0xff]
          %v1840 = vld [vmem:[%s365 + $0xc8] sm:$0xff]
          %v1841 = vld [vmem:[%s365 + $0xd0] sm:$0xff]
          %v1842 = vld [vmem:[%s365 + $0xd8] sm:$0xff]
          %v1843 = vld [vmem:[%s365 + $0xe0] sm:$0xff]
          %v1844 = vld [vmem:[%s365 + $0xe8] sm:$0xff]
          %v1845 = vld [vmem:[%s365 + $0xf0] sm:$0xff]
          %v1846 = vld [vmem:[%s365 + $0xf8] sm:$0xff]
          %v1847 = vld [vmem:[#allocation8] sm:$0xff]
          %v1848 = vld [vmem:[#allocation8 + $0x8] sm:$0xff]
          %v1849 = vld [vmem:[#allocation8 + $0x10] sm:$0xff]
          %v1850 = vld [vmem:[#allocation8 + $0x18] sm:$0xff]
          %v1851 = vld [vmem:[#allocation8 + $0x20] sm:$0xff]
          %v1852 = vld [vmem:[#allocation8 + $0x28] sm:$0xff]
          %v1853 = vld [vmem:[#allocation8 + $0x30] sm:$0xff]
          %v1854 = vld [vmem:[#allocation8 + $0x38] sm:$0xff]
          %v1855 = vld [vmem:[#allocation8 + $0x40] sm:$0xff]
          %v1856 = vld [vmem:[#allocation8 + $0x48] sm:$0xff]
          %v1857 = vld [vmem:[#allocation8 + $0x50] sm:$0xff]
          %v1858 = vld [vmem:[#allocation8 + $0x58] sm:$0xff]
          %v1859 = vld [vmem:[#allocation8 + $0x60] sm:$0xff]
          %v1860 = vld [vmem:[#allocation8 + $0x68] sm:$0xff]
          %v1861 = vld [vmem:[#allocation8 + $0x70] sm:$0xff]
          %v1862 = vld [vmem:[#allocation8 + $0x78] sm:$0xff]
          %v1863 = vld [vmem:[#allocation9] sm:$0xff]
          %v1864 = vld [vmem:[#allocation9 + $0x8] sm:$0xff]
          %v1865 = vld [vmem:[#allocation9 + $0x10] sm:$0xff]
          %v1866 = vld [vmem:[#allocation9 + $0x18] sm:$0xff]
          %v1867 = vld [vmem:[#allocation9 + $0x20] sm:$0xff]
          %v1868 = vld [vmem:[#allocation9 + $0x28] sm:$0xff]
          %v1869 = vld [vmem:[#allocation9 + $0x30] sm:$0xff]
          %v1870 = vld [vmem:[#allocation9 + $0x38] sm:$0xff]
          %v1871 = vld [vmem:[#allocation9 + $0x40] sm:$0xff]
          %v1872 = vld [vmem:[#allocation9 + $0x48] sm:$0xff]
          %v1873 = vld [vmem:[#allocation9 + $0x50] sm:$0xff]
          %v1874 = vld [vmem:[#allocation9 + $0x58] sm:$0xff]
          %v1875 = vld [vmem:[#allocation9 + $0x60] sm:$0xff]
          %v1876 = vld [vmem:[#allocation9 + $0x68] sm:$0xff]
          %v1877 = vld [vmem:[#allocation9 + $0x70] sm:$0xff]
          %v1878 = vld [vmem:[#allocation9 + $0x78] sm:$0xff]
          %1879 = vmatprep.subr.mxu0 0.0
          %1880 = vmatpush1.msra.mxu0 %v1863
          %1881 = vmatprep.subr.mxu0 0.0
          %1882 = vmatpush1.msra.mxu0 %v1864
          %1883 = vmatprep.subr.mxu0 0.0
          %1884 = vmatpush1.msra.mxu0 %v1865
          %1885 = vmatprep.subr.mxu0 0.0
          %1886 = vmatpush1.msra.mxu0 %v1866
          %1887 = vmatprep.subr.mxu0 0.0
          %1888 = vmatpush1.msra.mxu0 %v1867
          %1889 = vmatprep.subr.mxu0 0.0
          %1890 = vmatpush1.msra.mxu0 %v1868
          %1891 = vmatprep.subr.mxu0 0.0
          %1892 = vmatpush1.msra.mxu0 %v1869
          %1893 = vmatprep.subr.mxu0 0.0
          %1894 = vmatpush1.msra.mxu0 %v1870
          %1895 = vmatprep.subr.mxu0 0.0
          %1896 = vmatpush1.msra.mxu0 %v1871
          %1897 = vmatprep.subr.mxu0 0.0
          %1898 = vmatpush1.msra.mxu0 %v1872
          %1899 = vmatprep.subr.mxu0 0.0
          %1900 = vmatpush1.msra.mxu0 %v1873
          %1901 = vmatprep.subr.mxu0 0.0
          %1902 = vmatpush1.msra.mxu0 %v1874
          %1903 = vmatprep.subr.mxu0 0.0
          %1904 = vmatpush1.msra.mxu0 %v1875
          %1905 = vmatprep.subr.mxu0 0.0
          %1906 = vmatpush1.msra.mxu0 %v1876
          %1907 = vmatprep.subr.mxu0 0.0
          %1908 = vmatpush1.msra.mxu0 %v1877
          %1909 = vmatprep.subr.mxu0 0.0
          %1910 = vmatpush1.msra.mxu0 %v1878
          %1911 = vmatprep.subr.mxu0 0.0
          %1912 = vmatpush1.msra.mxu0 0.0
          %1913 = vmatprep.subr.mxu0 0.0
          %1914 = vmatpush1.msra.mxu0 0.0
          %1915 = vmatprep.subr.mxu0 0.0
          %1916 = vmatpush1.msra.mxu0 0.0
          %1917 = vmatprep.subr.mxu0 0.0
          %1918 = vmatpush1.msra.mxu0 0.0
          %1919 = vmatprep.subr.mxu0 0.0
          %1920 = vmatpush1.msra.mxu0 0.0
          %1921 = vmatprep.subr.mxu0 0.0
          %1922 = vmatpush1.msra.mxu0 0.0
          %1923 = vmatprep.subr.mxu0 0.0
          %1924 = vmatpush1.msra.mxu0 0.0
          %1925 = vmatprep.subr.mxu0 0.0
          %1926 = vmatpush1.msra.mxu0 0.0
          %1927 = vmatprep.subr.mxu0 0.0
          %1928 = vmatpush1.msra.mxu0 0.0
          %1929 = vmatprep.subr.mxu0 0.0
          %1930 = vmatpush1.msra.mxu0 0.0
          %1931 = vmatprep.subr.mxu0 0.0
          %1932 = vmatpush1.msra.mxu0 0.0
          %1933 = vmatprep.subr.mxu0 0.0
          %1934 = vmatpush1.msra.mxu0 0.0
          %1935 = vmatprep.subr.mxu0 0.0
          %1936 = vmatpush1.msra.mxu0 0.0
          %1937 = vmatprep.subr.mxu0 0.0
          %1938 = vmatpush1.msra.mxu0 0.0
          %1939 = vmatprep.subr.mxu0 0.0
          %1940 = vmatpush1.msra.mxu0 0.0
          %1941 = vmatprep.subr.mxu0 0.0
          %1942 = vmatpush1.msra.mxu0 0.0
          %1943 = vmatprep.mubr.f32.mxu0 0.0
          %1944 = vmatmul.mubr.f32.gmra.mrb[0].mxu0 %v1752
          %v1945 = vpop.f32.mrb[0].mxu0
          %v1946 = vadd.f32 0.0, %v1945
          %v1947 = vpop.f32.mrb[0].mxu0
          %1948 = vmatprep.mubr.f32.mxu0 0.0
          %1949 = vmatmul.mubr.f32.gmra.mrb[0].mxu0 %v1754
          %v1950 = vpop.f32.mrb[0].mxu0
          %v1951 = vadd.f32 0.0, %v1950
          %v1952 = vpop.f32.mrb[0].mxu0
          %1953 = vmatprep.mubr.f32.mxu0 0.0
          %1954 = vmatmul.mubr.f32.gmra.mrb[0].mxu0 %v1756
          %v1955 = vpop.f32.mrb[0].mxu0
          %v1956 = vadd.f32 0.0, %v1955
          %v1957 = vpop.f32.mrb[0].mxu0
          %1958 = vmatprep.mubr.f32.mxu0 0.0
          %1959 = vmatmul.mubr.f32.gmra.mrb[0].mxu0 %v1758
          %v1960 = vpop.f32.mrb[0].mxu0
          %v1961 = vadd.f32 0.0, %v1960
          %v1962 = vpop.f32.mrb[0].mxu0
          %1963 = vmatprep.mubr.f32.mxu0 0.0
          %1964 = vmatmul.mubr.f32.gmra.mrb[0].mxu0 %v1760
          %v1965 = vpop.f32.mrb[0].mxu0
          %v1966 = vadd.f32 0.0, %v1965
          %v1967 = vpop.f32.mrb[0].mxu0
          %1968 = vmatprep.mubr.f32.mxu0 0.0
          %1969 = vmatmul.mubr.f32.gmra.mrb[0].mxu0 %v1762
          %v1970 = vpop.f32.mrb[0].mxu0
          %v1971 = vadd.f32 0.0, %v1970
          %v1972 = vpop.f32.mrb[0].mxu0
          %1973 = vmatprep.mubr.f32.mxu0 0.0
          %1974 = vmatmul.mubr.f32.gmra.mrb[0].mxu0 %v1764
          %v1975 = vpop.f32.mrb[0].mxu0
          %v1976 = vadd.f32 0.0, %v1975
          %v1977 = vpop.f32.mrb[0].mxu0
          %1978 = vmatprep.mubr.f32.mxu0 0.0
          %1979 = vmatmul.mubr.f32.gmra.mrb[0].mxu0 %v1766
          %v1980 = vpop.f32.mrb[0].mxu0
          %v1981 = vadd.f32 0.0, %v1980
          %v1982 = vpop.f32.mrb[0].mxu0
          %1983 = vmatprep.mubr.f32.mxu0 0.0
          %1984 = vmatmul.mubr.f32.gmra.mrb[0].mxu0 %v1768
          %v1985 = vpop.f32.mrb[0].mxu0
          %v1986 = vadd.f32 0.0, %v1985
          %v1987 = vpop.f32.mrb[0].mxu0
          %1988 = vmatprep.mubr.f32.mxu0 0.0
          %1989 = vmatmul.mubr.f32.gmra.mrb[0].mxu0 %v1770
          %v1990 = vpop.f32.mrb[0].mxu0
          %v1991 = vadd.f32 0.0, %v1990
          %v1992 = vpop.f32.mrb[0].mxu0
          %1993 = vmatprep.mubr.f32.mxu0 0.0
          %1994 = vmatmul.mubr.f32.gmra.mrb[0].mxu0 %v1772
          %v1995 = vpop.f32.mrb[0].mxu0
          %v1996 = vadd.f32 0.0, %v1995
          %v1997 = vpop.f32.mrb[0].mxu0
          %1998 = vmatprep.mubr.f32.mxu0 0.0
          %1999 = vmatmul.mubr.f32.gmra.mrb[0].mxu0 %v1774
          %v2000 = vpop.f32.mrb[0].mxu0
          %v2001 = vadd.f32 0.0, %v2000
          %v2002 = vpop.f32.mrb[0].mxu0
          %2003 = vmatprep.mubr.f32.mxu0 0.0
          %2004 = vmatmul.mubr.f32.gmra.mrb[0].mxu0 %v1776
          %v2005 = vpop.f32.mrb[0].mxu0
          %v2006 = vadd.f32 0.0, %v2005
          %v2007 = vpop.f32.mrb[0].mxu0
          %2008 = vmatprep.mubr.f32.mxu0 0.0
          %2009 = vmatmul.mubr.f32.gmra.mrb[0].mxu0 %v1778
          %v2010 = vpop.f32.mrb[0].mxu0
          %v2011 = vadd.f32 0.0, %v2010
          %v2012 = vpop.f32.mrb[0].mxu0
          %2013 = vmatprep.mubr.f32.mxu0 0.0
          %2014 = vmatmul.mubr.f32.gmra.mrb[0].mxu0 %v1780
          %v2015 = vpop.f32.mrb[0].mxu0
          %v2016 = vadd.f32 0.0, %v2015
          %v2017 = vpop.f32.mrb[0].mxu0
          %2018 = vmatprep.mubr.f32.mxu0 0.0
          %2019 = vmatmul.mubr.f32.gmra.mrb[0].mxu0 %v1782
          %v2020 = vpop.f32.mrb[0].mxu0
          %v2021 = vadd.f32 0.0, %v2020
          %v2022 = vpop.f32.mrb[0].mxu0
          %2023 = vmatprep.mubr.f32.mxu0 0.0
          %2024 = vmatmul.mubr.f32.gmra.mrb[0].mxu0 %v1784
          %v2025 = vpop.f32.mrb[0].mxu0
          %v2026 = vadd.f32 0.0, %v2025
          %v2027 = vpop.f32.mrb[0].mxu0
          %2028 = vmatprep.mubr.f32.mxu0 0.0
          %2029 = vmatmul.mubr.f32.gmra.mrb[0].mxu0 %v1786
          %v2030 = vpop.f32.mrb[0].mxu0
          %v2031 = vadd.f32 0.0, %v2030
          %v2032 = vpop.f32.mrb[0].mxu0
          %2033 = vmatprep.mubr.f32.mxu0 0.0
          %2034 = vmatmul.mubr.f32.gmra.mrb[0].mxu0 %v1788
          %v2035 = vpop.f32.mrb[0].mxu0
          %v2036 = vadd.f32 0.0, %v2035
          %v2037 = vpop.f32.mrb[0].mxu0
          %2038 = vmatprep.mubr.f32.mxu0 0.0
          %2039 = vmatmul.mubr.f32.gmra.mrb[0].mxu0 %v1790
          %v2040 = vpop.f32.mrb[0].mxu0
          %v2041 = vadd.f32 0.0, %v2040
          %v2042 = vpop.f32.mrb[0].mxu0
          %2043 = vmatprep.mubr.f32.mxu0 0.0
          %2044 = vmatmul.mubr.f32.gmra.mrb[0].mxu0 %v1792
          %v2045 = vpop.f32.mrb[0].mxu0
          %v2046 = vadd.f32 0.0, %v2045
          %v2047 = vpop.f32.mrb[0].mxu0
          %2048 = vmatprep.mubr.f32.mxu0 0.0
          %2049 = vmatmul.mubr.f32.gmra.mrb[0].mxu0 %v1794
          %v2050 = vpop.f32.mrb[0].mxu0
          %v2051 = vadd.f32 0.0, %v2050
          %v2052 = vpop.f32.mrb[0].mxu0
          %2053 = vmatprep.mubr.f32.mxu0 0.0
          %2054 = vmatmul.mubr.f32.gmra.mrb[0].mxu0 %v1796
          %v2055 = vpop.f32.mrb[0].mxu0
          %v2056 = vadd.f32 0.0, %v2055
          %v2057 = vpop.f32.mrb[0].mxu0
          %2058 = vmatprep.mubr.f32.mxu0 0.0
          %2059 = vmatmul.mubr.f32.gmra.mrb[0].mxu0 %v1798
          %v2060 = vpop.f32.mrb[0].mxu0
          %v2061 = vadd.f32 0.0, %v2060
          %v2062 = vpop.f32.mrb[0].mxu0
          %2063 = vmatprep.mubr.f32.mxu0 0.0
          %2064 = vmatmul.mubr.f32.gmra.mrb[0].mxu0 %v1800
          %v2065 = vpop.f32.mrb[0].mxu0
          %v2066 = vadd.f32 0.0, %v2065
          %v2067 = vpop.f32.mrb[0].mxu0
          %2068 = vmatprep.mubr.f32.mxu0 0.0
          %2069 = vmatmul.mubr.f32.gmra.mrb[0].mxu0 %v1802
          %v2070 = vpop.f32.mrb[0].mxu0
          %v2071 = vadd.f32 0.0, %v2070
          %v2072 = vpop.f32.mrb[0].mxu0
          %2073 = vmatprep.mubr.f32.mxu0 0.0
          %2074 = vmatmul.mubr.f32.gmra.mrb[0].mxu0 %v1804
          %v2075 = vpop.f32.mrb[0].mxu0
          %v2076 = vadd.f32 0.0, %v2075
          %v2077 = vpop.f32.mrb[0].mxu0
          %2078 = vmatprep.mubr.f32.mxu0 0.0
          %2079 = vmatmul.mubr.f32.gmra.mrb[0].mxu0 %v1806
          %v2080 = vpop.f32.mrb[0].mxu0
          %v2081 = vadd.f32 0.0, %v2080
          %v2082 = vpop.f32.mrb[0].mxu0
          %2083 = vmatprep.mubr.f32.mxu0 0.0
          %2084 = vmatmul.mubr.f32.gmra.mrb[0].mxu0 %v1808
          %v2085 = vpop.f32.mrb[0].mxu0
          %v2086 = vadd.f32 0.0, %v2085
          %v2087 = vpop.f32.mrb[0].mxu0
          %2088 = vmatprep.mubr.f32.mxu0 0.0
          %2089 = vmatmul.mubr.f32.gmra.mrb[0].mxu0 %v1810
          %v2090 = vpop.f32.mrb[0].mxu0
          %v2091 = vadd.f32 0.0, %v2090
          %v2092 = vpop.f32.mrb[0].mxu0
          %2093 = vmatprep.mubr.f32.mxu0 0.0
          %2094 = vmatmul.mubr.f32.gmra.mrb[0].mxu0 %v1812
          %v2095 = vpop.f32.mrb[0].mxu0
          %v2096 = vadd.f32 0.0, %v2095
          %v2097 = vpop.f32.mrb[0].mxu0
          %2098 = vmatprep.mubr.f32.mxu0 0.0
          %2099 = vmatmul.mubr.f32.gmra.mrb[0].mxu0 %v1814
          %v2100 = vpop.f32.mrb[0].mxu0
          %v2101 = vadd.f32 0.0, %v2100
          %v2102 = vpop.f32.mrb[0].mxu0
          %2103 = vdwg.mxu0
          %2104 = vmatprep.subr.mxu0 0.0
          %2105 = vmatpush1.msra.mxu0 %v1847
          %2106 = vmatprep.subr.mxu0 0.0
          %2107 = vmatpush1.msra.mxu0 %v1848
          %2108 = vmatprep.subr.mxu0 0.0
          %2109 = vmatpush1.msra.mxu0 %v1849
          %2110 = vmatprep.subr.mxu0 0.0
          %2111 = vmatpush1.msra.mxu0 %v1850
          %2112 = vmatprep.subr.mxu0 0.0
          %2113 = vmatpush1.msra.mxu0 %v1851
          %2114 = vmatprep.subr.mxu0 0.0
          %2115 = vmatpush1.msra.mxu0 %v1852
          %2116 = vmatprep.subr.mxu0 0.0
          %2117 = vmatpush1.msra.mxu0 %v1853
          %2118 = vmatprep.subr.mxu0 0.0
          %2119 = vmatpush1.msra.mxu0 %v1854
          %2120 = vmatprep.subr.mxu0 0.0
          %2121 = vmatpush1.msra.mxu0 %v1855
          %2122 = vmatprep.subr.mxu0 0.0
          %2123 = vmatpush1.msra.mxu0 %v1856
          %2124 = vmatprep.subr.mxu0 0.0
          %2125 = vmatpush1.msra.mxu0 %v1857
          %2126 = vmatprep.subr.mxu0 0.0
          %2127 = vmatpush1.msra.mxu0 %v1858
          %2128 = vmatprep.subr.mxu0 0.0
          %2129 = vmatpush1.msra.mxu0 %v1859
          %2130 = vmatprep.subr.mxu0 0.0
          %2131 = vmatpush1.msra.mxu0 %v1860
          %2132 = vmatprep.subr.mxu0 0.0
          %2133 = vmatpush1.msra.mxu0 %v1861
          %2134 = vmatprep.subr.mxu0 0.0
          %2135 = vmatpush1.msra.mxu0 %v1862
          %2136 = vmatprep.subr.mxu0 0.0
          %2137 = vmatpush1.msra.mxu0 0.0
          %2138 = vmatprep.subr.mxu0 0.0
          %2139 = vmatpush1.msra.mxu0 0.0
          %2140 = vmatprep.subr.mxu0 0.0
          %2141 = vmatpush1.msra.mxu0 0.0
          %2142 = vmatprep.subr.mxu0 0.0
          %2143 = vmatpush1.msra.mxu0 0.0
          %2144 = vmatprep.subr.mxu0 0.0
          %2145 = vmatpush1.msra.mxu0 0.0
          %2146 = vmatprep.subr.mxu0 0.0
          %2147 = vmatpush1.msra.mxu0 0.0
          %2148 = vmatprep.subr.mxu0 0.0
          %2149 = vmatpush1.msra.mxu0 0.0
          %2150 = vmatprep.subr.mxu0 0.0
          %2151 = vmatpush1.msra.mxu0 0.0
          %2152 = vmatprep.subr.mxu0 0.0
          %2153 = vmatpush1.msra.mxu0 0.0
          %2154 = vmatprep.subr.mxu0 0.0
          %2155 = vmatpush1.msra.mxu0 0.0
          %2156 = vmatprep.subr.mxu0 0.0
          %2157 = vmatpush1.msra.mxu0 0.0
          %2158 = vmatprep.subr.mxu0 0.0
          %2159 = vmatpush1.msra.mxu0 0.0
          %2160 = vmatprep.subr.mxu0 0.0
          %2161 = vmatpush1.msra.mxu0 0.0
          %2162 = vmatprep.subr.mxu0 0.0
          %2163 = vmatpush1.msra.mxu0 0.0
          %2164 = vmatprep.subr.mxu0 0.0
          %2165 = vmatpush1.msra.mxu0 0.0
          %2166 = vmatprep.subr.mxu0 0.0
          %2167 = vmatpush1.msra.mxu0 0.0
          %2168 = vmatprep.mubr.f32.mxu0 0.0
          %2169 = vmatmul.mubr.f32.gmra.mrb[0].mxu0 %v1815
          %v2170 = vpop.f32.mrb[0].mxu0
          %v2171 = vadd.f32 %v1946, %v2170
          %v2172 = vpop.f32.mrb[0].mxu0
          %2173 = vmatprep.mubr.f32.mxu0 0.0
          %2174 = vmatmul.mubr.f32.gmra.mrb[0].mxu0 %v1816
          %v2175 = vpop.f32.mrb[0].mxu0
          %v2176 = vadd.f32 %v1951, %v2175
          %v2177 = vpop.f32.mrb[0].mxu0
          %2178 = vmatprep.mubr.f32.mxu0 0.0
          %2179 = vmatmul.mubr.f32.gmra.mrb[0].mxu0 %v1817
          %v2180 = vpop.f32.mrb[0].mxu0
          %v2181 = vadd.f32 %v1956, %v2180
          %v2182 = vpop.f32.mrb[0].mxu0
          %2183 = vmatprep.mubr.f32.mxu0 0.0
          %2184 = vmatmul.mubr.f32.gmra.mrb[0].mxu0 %v1818
          %v2185 = vpop.f32.mrb[0].mxu0
          %v2186 = vadd.f32 %v1961, %v2185
          %v2187 = vpop.f32.mrb[0].mxu0
          %2188 = vmatprep.mubr.f32.mxu0 0.0
          %2189 = vmatmul.mubr.f32.gmra.mrb[0].mxu0 %v1819
          %v2190 = vpop.f32.mrb[0].mxu0
          %v2191 = vadd.f32 %v1966, %v2190
          %v2192 = vpop.f32.mrb[0].mxu0
          %2193 = vmatprep.mubr.f32.mxu0 0.0
          %2194 = vmatmul.mubr.f32.gmra.mrb[0].mxu0 %v1820
          %v2195 = vpop.f32.mrb[0].mxu0
          %v2196 = vadd.f32 %v1971, %v2195
          %v2197 = vpop.f32.mrb[0].mxu0
          %2198 = vmatprep.mubr.f32.mxu0 0.0
          %2199 = vmatmul.mubr.f32.gmra.mrb[0].mxu0 %v1821
          %v2200 = vpop.f32.mrb[0].mxu0
          %v2201 = vadd.f32 %v1976, %v2200
          %v2202 = vpop.f32.mrb[0].mxu0
          %2203 = vmatprep.mubr.f32.mxu0 0.0
          %2204 = vmatmul.mubr.f32.gmra.mrb[0].mxu0 %v1822
          %v2205 = vpop.f32.mrb[0].mxu0
          %v2206 = vadd.f32 %v1981, %v2205
          %v2207 = vpop.f32.mrb[0].mxu0
          %2208 = vmatprep.mubr.f32.mxu0 0.0
          %2209 = vmatmul.mubr.f32.gmra.mrb[0].mxu0 %v1823
          %v2210 = vpop.f32.mrb[0].mxu0
          %v2211 = vadd.f32 %v1986, %v2210
          %v2212 = vpop.f32.mrb[0].mxu0
          %2213 = vmatprep.mubr.f32.mxu0 0.0
          %2214 = vmatmul.mubr.f32.gmra.mrb[0].mxu0 %v1824
          %v2215 = vpop.f32.mrb[0].mxu0
          %v2216 = vadd.f32 %v1991, %v2215
          %v2217 = vpop.f32.mrb[0].mxu0
          %2218 = vmatprep.mubr.f32.mxu0 0.0
          %2219 = vmatmul.mubr.f32.gmra.mrb[0].mxu0 %v1825
          %v2220 = vpop.f32.mrb[0].mxu0
          %v2221 = vadd.f32 %v1996, %v2220
          %v2222 = vpop.f32.mrb[0].mxu0
          %2223 = vmatprep.mubr.f32.mxu0 0.0
          %2224 = vmatmul.mubr.f32.gmra.mrb[0].mxu0 %v1826
          %v2225 = vpop.f32.mrb[0].mxu0
          %v2226 = vadd.f32 %v2001, %v2225
          %v2227 = vpop.f32.mrb[0].mxu0
          %2228 = vmatprep.mubr.f32.mxu0 0.0
          %2229 = vmatmul.mubr.f32.gmra.mrb[0].mxu0 %v1827
          %v2230 = vpop.f32.mrb[0].mxu0
          %v2231 = vadd.f32 %v2006, %v2230
          %v2232 = vpop.f32.mrb[0].mxu0
          %2233 = vmatprep.mubr.f32.mxu0 0.0
          %2234 = vmatmul.mubr.f32.gmra.mrb[0].mxu0 %v1828
          %v2235 = vpop.f32.mrb[0].mxu0
          %v2236 = vadd.f32 %v2011, %v2235
          %v2237 = vpop.f32.mrb[0].mxu0
          %2238 = vmatprep.mubr.f32.mxu0 0.0
          %2239 = vmatmul.mubr.f32.gmra.mrb[0].mxu0 %v1829
          %v2240 = vpop.f32.mrb[0].mxu0
          %v2241 = vadd.f32 %v2016, %v2240
          %v2242 = vpop.f32.mrb[0].mxu0
          %2243 = vmatprep.mubr.f32.mxu0 0.0
          %2244 = vmatmul.mubr.f32.gmra.mrb[0].mxu0 %v1830
          %v2245 = vpop.f32.mrb[0].mxu0
          %v2246 = vadd.f32 %v2021, %v2245
          %v2247 = vpop.f32.mrb[0].mxu0
          %2248 = vmatprep.mubr.f32.mxu0 0.0
          %2249 = vmatmul.mubr.f32.gmra.mrb[0].mxu0 %v1831
          %v2250 = vpop.f32.mrb[0].mxu0
          %v2251 = vadd.f32 %v2026, %v2250
          %v2252 = vpop.f32.mrb[0].mxu0
          %2253 = vmatprep.mubr.f32.mxu0 0.0
          %2254 = vmatmul.mubr.f32.gmra.mrb[0].mxu0 %v1832
          %v2255 = vpop.f32.mrb[0].mxu0
          %v2256 = vadd.f32 %v2031, %v2255
          %v2257 = vpop.f32.mrb[0].mxu0
          %2258 = vmatprep.mubr.f32.mxu0 0.0
          %2259 = vmatmul.mubr.f32.gmra.mrb[0].mxu0 %v1833
          %v2260 = vpop.f32.mrb[0].mxu0
          %v2261 = vadd.f32 %v2036, %v2260
          %v2262 = vpop.f32.mrb[0].mxu0
          %2263 = vmatprep.mubr.f32.mxu0 0.0
          %2264 = vmatmul.mubr.f32.gmra.mrb[0].mxu0 %v1834
          %v2265 = vpop.f32.mrb[0].mxu0
          %v2266 = vadd.f32 %v2041, %v2265
          %v2267 = vpop.f32.mrb[0].mxu0
          %2268 = vmatprep.mubr.f32.mxu0 0.0
          %2269 = vmatmul.mubr.f32.gmra.mrb[0].mxu0 %v1835
          %v2270 = vpop.f32.mrb[0].mxu0
          %v2271 = vadd.f32 %v2046, %v2270
          %v2272 = vpop.f32.mrb[0].mxu0
          %2273 = vmatprep.mubr.f32.mxu0 0.0
          %2274 = vmatmul.mubr.f32.gmra.mrb[0].mxu0 %v1836
          %v2275 = vpop.f32.mrb[0].mxu0
          %v2276 = vadd.f32 %v2051, %v2275
          %v2277 = vpop.f32.mrb[0].mxu0
          %2278 = vmatprep.mubr.f32.mxu0 0.0
          %2279 = vmatmul.mubr.f32.gmra.mrb[0].mxu0 %v1837
          %v2280 = vpop.f32.mrb[0].mxu0
          %v2281 = vadd.f32 %v2056, %v2280
          %v2282 = vpop.f32.mrb[0].mxu0
          %2283 = vmatprep.mubr.f32.mxu0 0.0
          %2284 = vmatmul.mubr.f32.gmra.mrb[0].mxu0 %v1838
          %v2285 = vpop.f32.mrb[0].mxu0
          %v2286 = vadd.f32 %v2061, %v2285
          %v2287 = vpop.f32.mrb[0].mxu0
          %2288 = vmatprep.mubr.f32.mxu0 0.0
          %2289 = vmatmul.mubr.f32.gmra.mrb[0].mxu0 %v1839
          %v2290 = vpop.f32.mrb[0].mxu0
          %v2291 = vadd.f32 %v2066, %v2290
          %v2292 = vpop.f32.mrb[0].mxu0
          %2293 = vmatprep.mubr.f32.mxu0 0.0
          %2294 = vmatmul.mubr.f32.gmra.mrb[0].mxu0 %v1840
          %v2295 = vpop.f32.mrb[0].mxu0
          %v2296 = vadd.f32 %v2071, %v2295
          %v2297 = vpop.f32.mrb[0].mxu0
          %2298 = vmatprep.mubr.f32.mxu0 0.0
          %2299 = vmatmul.mubr.f32.gmra.mrb[0].mxu0 %v1841
          %v2300 = vpop.f32.mrb[0].mxu0
          %v2301 = vadd.f32 %v2076, %v2300
          %v2302 = vpop.f32.mrb[0].mxu0
          %2303 = vmatprep.mubr.f32.mxu0 0.0
          %2304 = vmatmul.mubr.f32.gmra.mrb[0].mxu0 %v1842
          %v2305 = vpop.f32.mrb[0].mxu0
          %v2306 = vadd.f32 %v2081, %v2305
          %v2307 = vpop.f32.mrb[0].mxu0
          %2308 = vmatprep.mubr.f32.mxu0 0.0
          %2309 = vmatmul.mubr.f32.gmra.mrb[0].mxu0 %v1843
          %v2310 = vpop.f32.mrb[0].mxu0
          %v2311 = vadd.f32 %v2086, %v2310
          %v2312 = vpop.f32.mrb[0].mxu0
          %2313 = vmatprep.mubr.f32.mxu0 0.0
          %2314 = vmatmul.mubr.f32.gmra.mrb[0].mxu0 %v1844
          %v2315 = vpop.f32.mrb[0].mxu0
          %v2316 = vadd.f32 %v2091, %v2315
          %v2317 = vpop.f32.mrb[0].mxu0
          %2318 = vmatprep.mubr.f32.mxu0 0.0
          %2319 = vmatmul.mubr.f32.gmra.mrb[0].mxu0 %v1845
          %v2320 = vpop.f32.mrb[0].mxu0
          %v2321 = vadd.f32 %v2096, %v2320
          %v2322 = vpop.f32.mrb[0].mxu0
          %2323 = vmatprep.mubr.f32.mxu0 0.0
          %2324 = vmatmul.mubr.f32.gmra.mrb[0].mxu0 %v1846
          %v2325 = vpop.f32.mrb[0].mxu0
          %v2326 = vadd.f32 %v2101, %v2325
          %v2327 = vpop.f32.mrb[0].mxu0
          %2328 = vdwg.mxu0
          %v2329 = vld [vmem:[#allocation11] sm:$0x1]
          %v2331 = vlaneseq
          %v2332 = vshrl.u32 %v2331, 7
          %v2333 = vsub.s32 0, %v2332
          %v2334 = vrot.slane %v2329, %v2333
          %v2336 = vadd.f32 %v2171, %v2334
          %v2337 = vadd.f32 %v2176, %v2334
          %v2338 = vadd.f32 %v2181, %v2334
          %v2339 = vadd.f32 %v2186, %v2334
          %v2340 = vadd.f32 %v2191, %v2334
          %v2341 = vadd.f32 %v2196, %v2334
          %v2342 = vadd.f32 %v2201, %v2334
          %v2343 = vadd.f32 %v2206, %v2334
          %v2344 = vadd.f32 %v2211, %v2334
          %v2345 = vadd.f32 %v2216, %v2334
          %v2346 = vadd.f32 %v2221, %v2334
          %v2347 = vadd.f32 %v2226, %v2334
          %v2348 = vadd.f32 %v2231, %v2334
          %v2349 = vadd.f32 %v2236, %v2334
          %v2350 = vadd.f32 %v2241, %v2334
          %v2351 = vadd.f32 %v2246, %v2334
          %v2352 = vadd.f32 %v2251, %v2334
          %v2353 = vadd.f32 %v2256, %v2334
          %v2354 = vadd.f32 %v2261, %v2334
          %v2355 = vadd.f32 %v2266, %v2334
          %v2356 = vadd.f32 %v2271, %v2334
          %v2357 = vadd.f32 %v2276, %v2334
          %v2358 = vadd.f32 %v2281, %v2334
          %v2359 = vadd.f32 %v2286, %v2334
          %v2360 = vadd.f32 %v2291, %v2334
          %v2361 = vadd.f32 %v2296, %v2334
          %v2362 = vadd.f32 %v2301, %v2334
          %v2363 = vadd.f32 %v2306, %v2334
          %v2364 = vadd.f32 %v2311, %v2334
          %v2365 = vadd.f32 %v2316, %v2334
          %v2366 = vadd.f32 %v2321, %v2334
          %v2367 = vadd.f32 %v2326, %v2334
          %2368 = vst [vmem:[%s410] sm:$0xff] %v2336
          %2369 = vst [vmem:[%s410 + $0x8] sm:$0xff] %v2337
          %2370 = vst [vmem:[%s410 + $0x10] sm:$0xff] %v2338
          %2371 = vst [vmem:[%s410 + $0x18] sm:$0xff] %v2339
          %2372 = vst [vmem:[%s410 + $0x20] sm:$0xff] %v2340
          %2373 = vst [vmem:[%s410 + $0x28] sm:$0xff] %v2341
          %2374 = vst [vmem:[%s410 + $0x30] sm:$0xff] %v2342
          %2375 = vst [vmem:[%s410 + $0x38] sm:$0xff] %v2343
          %2376 = vst [vmem:[%s410 + $0x40] sm:$0xff] %v2344
          %2377 = vst [vmem:[%s410 + $0x48] sm:$0xff] %v2345
          %2378 = vst [vmem:[%s410 + $0x50] sm:$0xff] %v2346
          %2379 = vst [vmem:[%s410 + $0x58] sm:$0xff] %v2347
          %2380 = vst [vmem:[%s410 + $0x60] sm:$0xff] %v2348
          %2381 = vst [vmem:[%s410 + $0x68] sm:$0xff] %v2349
          %2382 = vst [vmem:[%s410 + $0x70] sm:$0xff] %v2350
          %2383 = vst [vmem:[%s410 + $0x78] sm:$0xff] %v2351
          %2384 = vst [vmem:[%s410 + $0x80] sm:$0xff] %v2352
          %2385 = vst [vmem:[%s410 + $0x88] sm:$0xff] %v2353
          %2386 = vst [vmem:[%s410 + $0x90] sm:$0xff] %v2354
          %2387 = vst [vmem:[%s410 + $0x98] sm:$0xff] %v2355
          %2388 = vst [vmem:[%s410 + $0xa0] sm:$0xff] %v2356
          %2389 = vst [vmem:[%s410 + $0xa8] sm:$0xff] %v2357
          %2390 = vst [vmem:[%s410 + $0xb0] sm:$0xff] %v2358
          %2391 = vst [vmem:[%s410 + $0xb8] sm:$0xff] %v2359
          %2392 = vst [vmem:[%s410 + $0xc0] sm:$0xff] %v2360
          %2393 = vst [vmem:[%s410 + $0xc8] sm:$0xff] %v2361
          %2394 = vst [vmem:[%s410 + $0xd0] sm:$0xff] %v2362
          %2395 = vst [vmem:[%s410 + $0xd8] sm:$0xff] %v2363
          %2396 = vst [vmem:[%s410 + $0xe0] sm:$0xff] %v2364
          %2397 = vst [vmem:[%s410 + $0xe8] sm:$0xff] %v2365
          %2398 = vst [vmem:[%s410 + $0xf0] sm:$0xff] %v2366
          %2399 = vst [vmem:[%s410 + $0xf8] sm:$0xff] %v2367
          %v2400 = vlaneseq
          %v2401 = vshrl.u32 %v2400, 7
          %v2402 = vadd.s32 %v2401, 8
          %v2403 = vadd.s32 %v2401, 16
          %v2404 = vadd.s32 %v2401, 24
          %v2405 = vadd.s32 %v2401, 32
          %v2406 = vadd.s32 %v2401, 40
          %v2407 = vadd.s32 %v2401, 48
          %v2408 = vadd.s32 %v2401, 56
          %v2409 = vadd.s32 %v2401, 64
          %v2410 = vadd.s32 %v2401, 72
          %v2411 = vadd.s32 %v2401, 80
          %v2412 = vadd.s32 %v2401, 88
          %v2413 = vadd.s32 %v2401, 96
          %v2414 = vadd.s32 %v2401, 104
          %v2415 = vadd.s32 %v2401, 112
          %v2416 = vadd.s32 %v2401, 120
          %v2417 = vadd.s32 %v2401, 128
          %v2418 = vadd.s32 %v2401, 136
          %v2419 = vadd.s32 %v2401, 144
          %v2420 = vadd.s32 %v2401, 152
          %v2421 = vadd.s32 %v2401, 160
          %v2422 = vadd.s32 %v2401, 168
          %v2423 = vadd.s32 %v2401, 176
          %v2424 = vadd.s32 %v2401, 184
          %v2425 = vadd.s32 %v2401, 192
          %v2426 = vadd.s32 %v2401, 200
          %v2427 = vadd.s32 %v2401, 208
          %v2428 = vadd.s32 %v2401, 216
          %v2429 = vadd.s32 %v2401, 224
          %v2430 = vadd.s32 %v2401, 232
          %v2431 = vadd.s32 %v2401, 240
          %v2432 = vadd.s32 %v2401, 248
          %v2433 = vstv %s423
          %v2434 = vadd.s32 %v2401, %v2433
          %v2435 = vadd.s32 %v2402, %v2433
          %v2436 = vadd.s32 %v2403, %v2433
          %v2437 = vadd.s32 %v2404, %v2433
          %v2438 = vadd.s32 %v2405, %v2433
          %v2439 = vadd.s32 %v2406, %v2433
          %v2440 = vadd.s32 %v2407, %v2433
          %v2441 = vadd.s32 %v2408, %v2433
          %v2442 = vadd.s32 %v2409, %v2433
          %v2443 = vadd.s32 %v2410, %v2433
          %v2444 = vadd.s32 %v2411, %v2433
          %v2445 = vadd.s32 %v2412, %v2433
          %v2446 = vadd.s32 %v2413, %v2433
          %v2447 = vadd.s32 %v2414, %v2433
          %v2448 = vadd.s32 %v2415, %v2433
          %v2449 = vadd.s32 %v2416, %v2433
          %v2450 = vadd.s32 %v2417, %v2433
          %v2451 = vadd.s32 %v2418, %v2433
          %v2452 = vadd.s32 %v2419, %v2433
          %v2453 = vadd.s32 %v2420, %v2433
          %v2454 = vadd.s32 %v2421, %v2433
          %v2455 = vadd.s32 %v2422, %v2433
          %v2456 = vadd.s32 %v2423, %v2433
          %v2457 = vadd.s32 %v2424, %v2433
          %v2458 = vadd.s32 %v2425, %v2433
          %v2459 = vadd.s32 %v2426, %v2433
          %v2460 = vadd.s32 %v2427, %v2433
          %v2461 = vadd.s32 %v2428, %v2433
          %v2462 = vadd.s32 %v2429, %v2433
          %v2463 = vadd.s32 %v2430, %v2433
          %v2464 = vadd.s32 %v2431, %v2433
          %v2465 = vadd.s32 %v2432, %v2433
          %vm2466 = vcmp.lt.s32.totalorder %v2434, 1024
          %vm2467 = vcmp.lt.s32.totalorder %v2435, 1024
          %vm2468 = vcmp.lt.s32.totalorder %v2436, 1024
          %vm2469 = vcmp.lt.s32.totalorder %v2437, 1024
          %vm2470 = vcmp.lt.s32.totalorder %v2438, 1024
          %vm2471 = vcmp.lt.s32.totalorder %v2439, 1024
          %vm2472 = vcmp.lt.s32.totalorder %v2440, 1024
          %vm2473 = vcmp.lt.s32.totalorder %v2441, 1024
          %vm2474 = vcmp.lt.s32.totalorder %v2442, 1024
          %vm2475 = vcmp.lt.s32.totalorder %v2443, 1024
          %vm2476 = vcmp.lt.s32.totalorder %v2444, 1024
          %vm2477 = vcmp.lt.s32.totalorder %v2445, 1024
          %vm2478 = vcmp.lt.s32.totalorder %v2446, 1024
          %vm2479 = vcmp.lt.s32.totalorder %v2447, 1024
          %vm2480 = vcmp.lt.s32.totalorder %v2448, 1024
          %vm2481 = vcmp.lt.s32.totalorder %v2449, 1024
          %vm2482 = vcmp.lt.s32.totalorder %v2450, 1024
          %vm2483 = vcmp.lt.s32.totalorder %v2451, 1024
          %vm2484 = vcmp.lt.s32.totalorder %v2452, 1024
          %vm2485 = vcmp.lt.s32.totalorder %v2453, 1024
          %vm2486 = vcmp.lt.s32.totalorder %v2454, 1024
          %vm2487 = vcmp.lt.s32.totalorder %v2455, 1024
          %vm2488 = vcmp.lt.s32.totalorder %v2456, 1024
          %vm2489 = vcmp.lt.s32.totalorder %v2457, 1024
          %vm2490 = vcmp.lt.s32.totalorder %v2458, 1024
          %vm2491 = vcmp.lt.s32.totalorder %v2459, 1024
          %vm2492 = vcmp.lt.s32.totalorder %v2460, 1024
          %vm2493 = vcmp.lt.s32.totalorder %v2461, 1024
          %vm2494 = vcmp.lt.s32.totalorder %v2462, 1024
          %vm2495 = vcmp.lt.s32.totalorder %v2463, 1024
          %vm2496 = vcmp.lt.s32.totalorder %v2464, 1024
          %vm2497 = vcmp.lt.s32.totalorder %v2465, 1024
          %v2498 = vsel %vm2466, 1, 0
          %v2499 = vsel %vm2467, 1, 0
          %v2500 = vsel %vm2468, 1, 0
          %v2501 = vsel %vm2469, 1, 0
          %v2502 = vsel %vm2470, 1, 0
          %v2503 = vsel %vm2471, 1, 0
          %v2504 = vsel %vm2472, 1, 0
          %v2505 = vsel %vm2473, 1, 0
          %v2506 = vsel %vm2474, 1, 0
          %v2507 = vsel %vm2475, 1, 0
          %v2508 = vsel %vm2476, 1, 0
          %v2509 = vsel %vm2477, 1, 0
          %v2510 = vsel %vm2478, 1, 0
          %v2511 = vsel %vm2479, 1, 0
          %v2512 = vsel %vm2480, 1, 0
          %v2513 = vsel %vm2481, 1, 0
          %v2514 = vsel %vm2482, 1, 0
          %v2515 = vsel %vm2483, 1, 0
          %v2516 = vsel %vm2484, 1, 0
          %v2517 = vsel %vm2485, 1, 0
          %v2518 = vsel %vm2486, 1, 0
          %v2519 = vsel %vm2487, 1, 0
          %v2520 = vsel %vm2488, 1, 0
          %v2521 = vsel %vm2489, 1, 0
          %v2522 = vsel %vm2490, 1, 0
          %v2523 = vsel %vm2491, 1, 0
          %v2524 = vsel %vm2492, 1, 0
          %v2525 = vsel %vm2493, 1, 0
          %v2526 = vsel %vm2494, 1, 0
          %v2527 = vsel %vm2495, 1, 0
          %v2528 = vsel %vm2496, 1, 0
          %v2529 = vsel %vm2497, 1, 0
          %vm2530 = vcmp.eq.s32.totalorder %v2498, 1
          %vm2531 = vcmp.eq.s32.totalorder %v2499, 1
          %vm2532 = vcmp.eq.s32.totalorder %v2500, 1
          %vm2533 = vcmp.eq.s32.totalorder %v2501, 1
          %vm2534 = vcmp.eq.s32.totalorder %v2502, 1
          %vm2535 = vcmp.eq.s32.totalorder %v2503, 1
          %vm2536 = vcmp.eq.s32.totalorder %v2504, 1
          %vm2537 = vcmp.eq.s32.totalorder %v2505, 1
          %vm2538 = vcmp.eq.s32.totalorder %v2506, 1
          %vm2539 = vcmp.eq.s32.totalorder %v2507, 1
          %vm2540 = vcmp.eq.s32.totalorder %v2508, 1
          %vm2541 = vcmp.eq.s32.totalorder %v2509, 1
          %vm2542 = vcmp.eq.s32.totalorder %v2510, 1
          %vm2543 = vcmp.eq.s32.totalorder %v2511, 1
          %vm2544 = vcmp.eq.s32.totalorder %v2512, 1
          %vm2545 = vcmp.eq.s32.totalorder %v2513, 1
          %vm2546 = vcmp.eq.s32.totalorder %v2514, 1
          %vm2547 = vcmp.eq.s32.totalorder %v2515, 1
          %vm2548 = vcmp.eq.s32.totalorder %v2516, 1
          %vm2549 = vcmp.eq.s32.totalorder %v2517, 1
          %vm2550 = vcmp.eq.s32.totalorder %v2518, 1
          %vm2551 = vcmp.eq.s32.totalorder %v2519, 1
          %vm2552 = vcmp.eq.s32.totalorder %v2520, 1
          %vm2553 = vcmp.eq.s32.totalorder %v2521, 1
          %vm2554 = vcmp.eq.s32.totalorder %v2522, 1
          %vm2555 = vcmp.eq.s32.totalorder %v2523, 1
          %vm2556 = vcmp.eq.s32.totalorder %v2524, 1
          %vm2557 = vcmp.eq.s32.totalorder %v2525, 1
          %vm2558 = vcmp.eq.s32.totalorder %v2526, 1
          %vm2559 = vcmp.eq.s32.totalorder %v2527, 1
          %vm2560 = vcmp.eq.s32.totalorder %v2528, 1
          %vm2561 = vcmp.eq.s32.totalorder %v2529, 1
          %v2562 = vsel %vm2530, %v2336, 0.0
          %v2563 = vsel %vm2531, %v2337, 0.0
          %v2564 = vsel %vm2532, %v2338, 0.0
          %v2565 = vsel %vm2533, %v2339, 0.0
          %v2566 = vsel %vm2534, %v2340, 0.0
          %v2567 = vsel %vm2535, %v2341, 0.0
          %v2568 = vsel %vm2536, %v2342, 0.0
          %v2569 = vsel %vm2537, %v2343, 0.0
          %v2570 = vsel %vm2538, %v2344, 0.0
          %v2571 = vsel %vm2539, %v2345, 0.0
          %v2572 = vsel %vm2540, %v2346, 0.0
          %v2573 = vsel %vm2541, %v2347, 0.0
          %v2574 = vsel %vm2542, %v2348, 0.0
          %v2575 = vsel %vm2543, %v2349, 0.0
          %v2576 = vsel %vm2544, %v2350, 0.0
          %v2577 = vsel %vm2545, %v2351, 0.0
          %v2578 = vsel %vm2546, %v2352, 0.0
          %v2579 = vsel %vm2547, %v2353, 0.0
          %v2580 = vsel %vm2548, %v2354, 0.0
          %v2581 = vsel %vm2549, %v2355, 0.0
          %v2582 = vsel %vm2550, %v2356, 0.0
          %v2583 = vsel %vm2551, %v2357, 0.0
          %v2584 = vsel %vm2552, %v2358, 0.0
          %v2585 = vsel %vm2553, %v2359, 0.0
          %v2586 = vsel %vm2554, %v2360, 0.0
          %v2587 = vsel %vm2555, %v2361, 0.0
          %v2588 = vsel %vm2556, %v2362, 0.0
          %v2589 = vsel %vm2557, %v2363, 0.0
          %v2590 = vsel %vm2558, %v2364, 0.0
          %v2591 = vsel %vm2559, %v2365, 0.0
          %v2592 = vsel %vm2560, %v2366, 0.0
          %v2593 = vsel %vm2561, %v2367, 0.0
          %v2594 = vadd.f32 %v2562, %v2563
          %v2595 = vadd.f32 %v2594, %v2564
          %v2596 = vadd.f32 %v2595, %v2565
          %v2597 = vadd.f32 %v2596, %v2566
          %v2598 = vadd.f32 %v2597, %v2567
          %v2599 = vadd.f32 %v2598, %v2568
          %v2600 = vadd.f32 %v2599, %v2569
          %v2601 = vadd.f32 %v2600, %v2570
          %v2602 = vadd.f32 %v2601, %v2571
          %v2603 = vadd.f32 %v2602, %v2572
          %v2604 = vadd.f32 %v2603, %v2573
          %v2605 = vadd.f32 %v2604, %v2574
          %v2606 = vadd.f32 %v2605, %v2575
          %v2607 = vadd.f32 %v2606, %v2576
          %v2608 = vadd.f32 %v2607, %v2577
          %v2609 = vadd.f32 %v2608, %v2578
          %v2610 = vadd.f32 %v2609, %v2579
          %v2611 = vadd.f32 %v2610, %v2580
          %v2612 = vadd.f32 %v2611, %v2581
          %v2613 = vadd.f32 %v2612, %v2582
          %v2614 = vadd.f32 %v2613, %v2583
          %v2615 = vadd.f32 %v2614, %v2584
          %v2616 = vadd.f32 %v2615, %v2585
          %v2617 = vadd.f32 %v2616, %v2586
          %v2618 = vadd.f32 %v2617, %v2587
          %v2619 = vadd.f32 %v2618, %v2588
          %v2620 = vadd.f32 %v2619, %v2589
          %v2621 = vadd.f32 %v2620, %v2590
          %v2622 = vadd.f32 %v2621, %v2591
          %v2623 = vadd.f32 %v2622, %v2592
          %v2624 = vadd.f32 %v2623, %v2593
          %v2625 = vrot.slane %v2624, 4
          %v2626 = vadd.f32 %v2624, %v2625
          %v2627 = vrot.slane %v2626, 2
          %v2628 = vadd.f32 %v2626, %v2627
          %v2629 = vrot.slane %v2628, 1
          %v2630 = vadd.f32 %v2628, %v2629
          %v2631 = vmul.f32 %v2562, %v2562
          %v2632 = vmul.f32 %v2563, %v2563
          %v2633 = vmul.f32 %v2564, %v2564
          %v2634 = vmul.f32 %v2565, %v2565
          %v2635 = vmul.f32 %v2566, %v2566
          %v2636 = vmul.f32 %v2567, %v2567
          %v2637 = vmul.f32 %v2568, %v2568
          %v2638 = vmul.f32 %v2569, %v2569
          %v2639 = vmul.f32 %v2570, %v2570
          %v2640 = vmul.f32 %v2571, %v2571
          %v2641 = vmul.f32 %v2572, %v2572
          %v2642 = vmul.f32 %v2573, %v2573
          %v2643 = vmul.f32 %v2574, %v2574
          %v2644 = vmul.f32 %v2575, %v2575
          %v2645 = vmul.f32 %v2576, %v2576
          %v2646 = vmul.f32 %v2577, %v2577
          %v2647 = vmul.f32 %v2578, %v2578
          %v2648 = vmul.f32 %v2579, %v2579
          %v2649 = vmul.f32 %v2580, %v2580
          %v2650 = vmul.f32 %v2581, %v2581
          %v2651 = vmul.f32 %v2582, %v2582
          %v2652 = vmul.f32 %v2583, %v2583
          %v2653 = vmul.f32 %v2584, %v2584
          %v2654 = vmul.f32 %v2585, %v2585
          %v2655 = vmul.f32 %v2586, %v2586
          %v2656 = vmul.f32 %v2587, %v2587
          %v2657 = vmul.f32 %v2588, %v2588
          %v2658 = vmul.f32 %v2589, %v2589
          %v2659 = vmul.f32 %v2590, %v2590
          %v2660 = vmul.f32 %v2591, %v2591
          %v2661 = vmul.f32 %v2592, %v2592
          %v2662 = vmul.f32 %v2593, %v2593
          %v2663 = vadd.f32 %v2631, %v2632
          %v2664 = vadd.f32 %v2663, %v2633
          %v2665 = vadd.f32 %v2664, %v2634
          %v2666 = vadd.f32 %v2665, %v2635
          %v2667 = vadd.f32 %v2666, %v2636
          %v2668 = vadd.f32 %v2667, %v2637
          %v2669 = vadd.f32 %v2668, %v2638
          %v2670 = vadd.f32 %v2669, %v2639
          %v2671 = vadd.f32 %v2670, %v2640
          %v2672 = vadd.f32 %v2671, %v2641
          %v2673 = vadd.f32 %v2672, %v2642
          %v2674 = vadd.f32 %v2673, %v2643
          %v2675 = vadd.f32 %v2674, %v2644
          %v2676 = vadd.f32 %v2675, %v2645
          %v2677 = vadd.f32 %v2676, %v2646
          %v2678 = vadd.f32 %v2677, %v2647
          %v2679 = vadd.f32 %v2678, %v2648
          %v2680 = vadd.f32 %v2679, %v2649
          %v2681 = vadd.f32 %v2680, %v2650
          %v2682 = vadd.f32 %v2681, %v2651
          %v2683 = vadd.f32 %v2682, %v2652
          %v2684 = vadd.f32 %v2683, %v2653
          %v2685 = vadd.f32 %v2684, %v2654
          %v2686 = vadd.f32 %v2685, %v2655
          %v2687 = vadd.f32 %v2686, %v2656
          %v2688 = vadd.f32 %v2687, %v2657
          %v2689 = vadd.f32 %v2688, %v2658
          %v2690 = vadd.f32 %v2689, %v2659
          %v2691 = vadd.f32 %v2690, %v2660
          %v2692 = vadd.f32 %v2691, %v2661
          %v2693 = vadd.f32 %v2692, %v2662
          %v2694 = vrot.slane %v2693, 4
          %v2695 = vadd.f32 %v2693, %v2694
          %v2696 = vrot.slane %v2695, 2
          %v2697 = vadd.f32 %v2695, %v2696
          %v2698 = vrot.slane %v2697, 1
          %v2699 = vadd.f32 %v2697, %v2698
          %vm2700 = vcmp.eq.s32.totalorder %v2401, 0
          %vm2701 = vcmp.eq.s32.totalorder %v2401, 1
          %v2702 = vsel %vm2701, %v2699, 0.0
          %v2703 = vsel %vm2700, %v2630, %v2702
          %2704 = vst [vmem:[%s417] sm:$0xff] %v2703
        $region76: #{tpu_custom_call.1} parent=43 // pred_fallthru
          _
        %s2705 = sand.u32 %s188, 1
        %s2706 = scalar_lea.sflag [#allocation4], %s2705
        %s2707 = sand.u32 %s188, 1
        %s2708 = smul.addr %s2707, 256
        %s2709 = scalar_lea.vmem [#allocation12], %s2708
        %s2710 = sand.u32 %s214, 1
        %s2711 = scalar_lea.sflag [#allocation14], %s2710
        %s2712 = sand.u32 %s214, 1
        %s2713 = smul.addr %s2712, 8
        %s2714 = scalar_lea.vmem [#allocation13], %s2713
        // Predicated region
        $region77: #{tpu_custom_call.1} parent=43 // pred_check
          %p2715 = pneg %p198
        $region78: #{tpu_custom_call.1} parent=43 // pred_check_branch
          %2717 = sbr.rel (%p2715) target = $region80
        $region79: #{tpu_custom_call.1} parent=43 // pred_region
          %s2718 = smul.u32 32, %s34
          %s2720 = ssub.s32 4096, 4096
          %2721 = vsyncadd %s2706, %s2720
          %s2722 = smul.addr %s2718, 128
          %s2723 = scalar_lea.hbm %s6, %s2722
          %s2724 = sshll.u32 %s2709, 4
          %s2725 = int_to_ptr.vmem [resolvable:$true] %s2724
          %2730 = dma.vmem_to_hbm [thread:$0]  %s2725, 4096, %s2723, %s2706, 128, 128, 8
        $region80: #{tpu_custom_call.1} parent=43 // pred_fallthru
          _
        // Predicated region
        $region81: #{tpu_custom_call.1} parent=43 // pred_check
          %p2731 = pneg %p224
        $region82: #{tpu_custom_call.1} parent=43 // pred_check_branch
          %2733 = sbr.rel (%p2731) target = $region84
        $region83: #{tpu_custom_call.1} parent=43 // pred_region
          %s2735 = ssub.s32 128, 128
          %2736 = vsyncadd %s2711, %s2735
          %s2737 = smul.addr %s34, 128
          %s2738 = scalar_lea.hbm %s7, %s2737
          %s2740 = sshll.u32 %s2714, 4
          %s2741 = int_to_ptr.vmem [resolvable:$true] %s2740
          %2743 = dma.vmem_to_hbm [thread:$0]  %s2741, 128, %s2738, %s2711
        $region84: #{tpu_custom_call.1} parent=43 // pred_fallthru
          _
      $region44: #{tpu_custom_call.1} parent=5 // pred_fallthru
        _
      %p2744 = scmp.le.s32.totalorder 2, %s25
      // Predicated region
      $region85: #{tpu_custom_call.1} parent=5 // pred_check
        %p2745 = pneg %p2744
      $region86: #{tpu_custom_call.1} parent=5 // pred_check_branch
        %2747 = sbr.rel (%p2745) target = $region88
      $region87: #{tpu_custom_call.1} parent=5 // pred_region
        %s2748 = ssub.s32 %s25, 2
        // Predicated region
        $region89: #{tpu_custom_call.1} parent=87 // pred_check
          %p2749 = pneg %p204
        $region90: #{tpu_custom_call.1} parent=87 // pred_check_branch
          %2751 = sbr.rel (%p2749) target = $region92
        $region91: #{tpu_custom_call.1} parent=87 // pred_region
          %s2752 = sand.u32 %s189, 1
          %s2753 = scalar_lea.sflag [#allocation4], %s2752
          %s2754 = sand.u32 %s189, 1
          %s2755 = smul.addr %s2754, 256
          %s2756 = scalar_lea.vmem [#allocation12], %s2755
          %2757 = dma.done %s2753, 4096
        $region92: #{tpu_custom_call.1} parent=87 // pred_fallthru
          _
        // Predicated region
        $region93: #{tpu_custom_call.1} parent=87 // pred_check
          %p2758 = pneg %p230
        $region94: #{tpu_custom_call.1} parent=87 // pred_check_branch
          %2760 = sbr.rel (%p2758) target = $region96
        $region95: #{tpu_custom_call.1} parent=87 // pred_region
          %s2761 = sand.u32 %s215, 1
          %s2762 = scalar_lea.sflag [#allocation14], %s2761
          %s2763 = sand.u32 %s215, 1
          %s2764 = smul.addr %s2763, 8
          %s2765 = scalar_lea.vmem [#allocation13], %s2764
          %2766 = dma.done %s2762, 128
        $region96: #{tpu_custom_call.1} parent=87 // pred_fallthru
          _
      $region88: #{tpu_custom_call.1} parent=5 // pred_fallthru
        _
    $region6: #{tpu_custom_call.1} parent=1 // loop_footer
      %s29 = sadd.s32 1, %s25
    $region7: #{tpu_custom_call.1} parent=1 // loop_footer_branch
      %24 = sbr.rel target = $region3
    $region8: #{tpu_custom_call.1} parent=1 // loop_exit
      _
    %2767 = vsyncpa [#allocation3], 1
    %s2768 = scalar_lea.sflag [#allocation3], 1
    %2769 = vsyncpa %s2768, 1
    %2770 = vsyncpa [#allocation6], 1
    %2771 = vsyncpa [#allocation10], 1
    %2772 = vsyncpa [#allocation4], 1
    %s2773 = scalar_lea.sflag [#allocation4], 1
    %2774 = vsyncpa %s2773, 1
    %2775 = vsyncpa [#allocation14], 1
    %s2776 = scalar_lea.sflag [#allocation14], 1
    %2777 = vsyncpa %s2776, 1

</llo_original>
